<compile_context>
chip_gen: v6e
topology: v6e:2x2x1
jax: 0.10.0
libtpu: 0.0.40
codegen_flags: <defaults>
</compile_context>

<pallas_src>
import jax
import jax.numpy as jnp
import numpy as np
from jax import lax
from jax.experimental import pallas as pl
from jax.experimental.pallas import tpu as pltpu

EPS = 1e-5


# ----------------------------------------------------------------------------
# Kernel: one grid step == b_tile batch elements.  Everything is fused:
#   * conv1 (1x1) + projection shortcut -> one MXU matmul on the shared x LHS
#   * conv2 (3x3, pad=1)                -> im2col + one MXU matmul (K = 9*P)
#   * conv3 (1x1)                       -> one MXU matmul
#   * folded-BN bias adds, ReLUs, residual add in f32 on the VPU.
# ----------------------------------------------------------------------------
def bottleneck_kernel(x_ref, w1c_ref, b1c_ref, w2_ref, b2_ref,
                      w3_ref, b3_ref, o_ref, pad_ref):
    B, H, W, Cin = x_ref.shape
    P = w2_ref.shape[1]            # w2 is (9*P, P)
    Cout = w3_ref.shape[1]
    M = B * H * W

    x2d = x_ref[...].reshape(M, Cin)                      # bf16, (M, Cin)

    # --- conv1 (1x1, BN-scale folded) + projection shortcut, one matmul ----
    yc = jnp.dot(x2d, w1c_ref[...], preferred_element_type=jnp.float32)
    yc = yc + b1c_ref[...]                                # f32 bias add
    y1 = jnp.maximum(yc[:, :P], 0.0)                      # conv1+bn1+relu
    sc = yc[:, P:]                                        # shortcut conv+bn

    # --- stage y1 into the padded (bf16) scratch for the 3x3 conv ----------
    # Only the 1-pixel halo is zeroed (every step, so correctness does not
    # depend on grid-axis scheduling); the interior is fully overwritten.
    dt = pad_ref.dtype
    pad_ref[:, 0:1, :, :] = jnp.zeros((B, 1, W + 2, P), dt)
    pad_ref[:, H + 1:H + 2, :, :] = jnp.zeros((B, 1, W + 2, P), dt)
    pad_ref[:, 1:H + 1, 0:1, :] = jnp.zeros((B, H, 1, P), dt)
    pad_ref[:, 1:H + 1, W + 1:W + 2, :] = jnp.zeros((B, H, 1, P), dt)
    pad_ref[:, 1:H + 1, 1:W + 1, :] = y1.reshape(B, H, W, P).astype(dt)

    # --- conv2 (3x3, stride=1, padding=1): im2col + single MXU matmul ------
    pieces = []
    for di in range(3):
        for dj in range(3):
            pieces.append(pad_ref[:, di:di + H, dj:dj + W, :].reshape(M, P))
    col = jnp.concatenate(pieces, axis=1)                 # (M, 9*P) bf16
    y2 = jnp.dot(col, w2_ref[...], preferred_element_type=jnp.float32)
    y2 = jnp.maximum(y2 + b2_ref[...], 0.0)               # bn2 bias + relu

    # --- conv3 (1x1) + bn3 bias, residual add, final relu ------------------
    y3 = jnp.dot(y2.astype(w3_ref.dtype), w3_ref[...],
                 preferred_element_type=jnp.float32)
    out = jnp.maximum(y3 + b3_ref[...] + sc, 0.0)
    o_ref[...] = out.reshape(B, H, W, Cout).astype(o_ref.dtype)


def _fold_bn(gamma, beta, mean, var):
    scale = gamma * lax.rsqrt(var + EPS)
    bias = beta - mean * scale
    return scale.astype(jnp.float32), bias.astype(jnp.float32)


def bottleneck_forward(x_nchw, params, stride=1, b_tile=None):
    """Runs the fused Bottleneck kernel. Returns NHWC output (f32)."""
    # TODO(synk): stride > 1 spatial subsampling of the 3x3 conv / shortcut is
    # not implemented in-kernel; only the stride=1 projection-shortcut case is.
    assert stride == 1

    x = jnp.transpose(x_nchw, (0, 2, 3, 1)).astype(jnp.float32)   # NCHW->NHWC
    N, H, W, Cin = x.shape
    P = params["conv1_w"].shape[1]
    Cout = params["conv3_w"].shape[1]

    s1, b1 = _fold_bn(*params["bn1"])
    s2, b2 = _fold_bn(*params["bn2"])
    s3, b3 = _fold_bn(*params["bn3"])
    ss, bs = _fold_bn(*params["bn_sc"])

    # Fold BN scales into the conv weights (per output channel).
    w1 = params["conv1_w"].astype(jnp.float32) * s1[None, :]            # (Cin, P)
    ws = params["sc_w"].astype(jnp.float32) * ss[None, :]               # (Cin, Cout)
    w2 = (params["conv2_w"].astype(jnp.float32)
          * s2[None, None, None, :]).reshape(9 * P, P)                  # (9P, P)
    w3 = params["conv3_w"].astype(jnp.float32) * s3[None, :]            # (P, Cout)

    # conv1 and projection shortcut share the x LHS -> one concatenated weight.
    w1c = jnp.concatenate([w1, ws], axis=1).astype(jnp.bfloat16)        # (Cin, P+Cout)
    b1c = jnp.concatenate([b1, bs]).reshape(1, P + Cout)                # f32

    x_bf = x.astype(jnp.bfloat16)
    w2_bf = w2.astype(jnp.bfloat16)
    w3_bf = w3.astype(jnp.bfloat16)
    b2r = b2.reshape(1, P)
    b3r = b3.reshape(1, Cout)

    # Batch tile: amortize per-grid-step overhead, keep >=2 grid steps so both
    # v7x TensorCores get work, and stay inside a conservative VMEM budget.
    if b_tile is None:
        per_img = (H * W * Cin * 2 * 2              # bf16 input block, 2 buffers
                   + H * W * Cout * 4 * 2           # f32 output block, 2 buffers
                   + (H + 2) * (W + 2) * P * 2      # bf16 pad scratch
                   + H * W * 9 * P * 2              # bf16 im2col value
                   + H * W * (P + Cout) * 4 * 4)    # f32 intermediates (rough)
        budget = 20 * 1024 * 1024
        b_tile = 1
        for b in range(1, N + 1):
            if N % b:
                continue
            if N >= 2 and N // b < 2:
                continue
            if b * per_img > budget:
                continue
            b_tile = b
    grid = (N // b_tile,)

    operands = (x_bf, w1c, b1c, w2_bf, b2r, w3_bf, b3r)

    def full_spec(a):
        nd = a.ndim
        return pl.BlockSpec(a.shape, lambda n, _nd=nd: (0,) * _nd)

    in_specs = [pl.BlockSpec((b_tile, H, W, Cin), lambda n: (n, 0, 0, 0))]
    in_specs += [full_spec(a) for a in operands[1:]]
    out_specs = pl.BlockSpec((b_tile, H, W, Cout), lambda n: (n, 0, 0, 0))

    return pl.pallas_call(
        bottleneck_kernel,
        out_shape=jax.ShapeDtypeStruct((N, H, W, Cout), jnp.float32),
        grid_spec=pltpu.PrefetchScalarGridSpec(
            num_scalar_prefetch=0,
            grid=grid,
            in_specs=in_specs,
            out_specs=out_specs,
            scratch_shapes=[pltpu.VMEM((b_tile, H + 2, W + 2, P),
                                       jnp.bfloat16)],
        ),
        compiler_params=pltpu.CompilerParams(
            dimension_semantics=("parallel",),
            vmem_limit_bytes=48 * 1024 * 1024),
    )(*operands)


# ----------------------------------------------------------------------------
# Pure-JAX f32 reference (same math, un-fused) for correctness checking.
# ----------------------------------------------------------------------------
def ref_forward(x_nchw, params, stride=1):
    x = jnp.transpose(x_nchw, (0, 2, 3, 1)).astype(jnp.float32)

    def bn(y, gamma, beta, mean, var):
        return (y - mean) * lax.rsqrt(var + EPS) * gamma + beta

    def conv1x1(y, w):
        return jnp.einsum('nhwc,co->nhwo', y, w)

    out = jax.nn.relu(bn(conv1x1(x, params["conv1_w"]), *params["bn1"]))
    out = lax.conv_general_dilated(
        out, params["conv2_w"], (stride, stride), ((1, 1), (1, 1)),
        dimension_numbers=('NHWC', 'HWIO', 'NHWC'))
    out = jax.nn.relu(bn(out, *params["bn2"]))
    out = bn(conv1x1(out, params["conv3_w"]), *params["bn3"])
    sc = bn(conv1x1(x, params["sc_w"]), *params["bn_sc"])
    out = jax.nn.relu(out + sc)
    return jnp.transpose(out, (0, 3, 1, 2))  # back to NCHW


if __name__ == "__main__":
    key = jax.random.PRNGKey(0)
    N, Cin, H, W = 2, 16, 8, 8          # x is NCHW like PyTorch
    planes = 8
    Cout = 4 * planes                    # expansion = 4 -> shortcut has conv+bn
    keys = jax.random.split(key, 10)

    def bn_params(k, c):
        k1, k2, k3, k4 = jax.random.split(k, 4)
        gamma = jax.random.uniform(k1, (c,), jnp.float32, 0.5, 1.5)
        beta = 0.1 * jax.random.normal(k2, (c,), jnp.float32)
        mean = 0.1 * jax.random.normal(k3, (c,), jnp.float32)
        var = jax.random.uniform(k4, (c,), jnp.float32, 0.5, 1.5)
        return (gamma, beta, mean, var)

    params = {
        "conv1_w": 0.1 * jax.random.normal(keys[0], (Cin, planes), jnp.float32),
        "bn1": bn_params(keys[1], planes),
        "conv2_w": 0.1 * jax.random.normal(keys[2], (3, 3, planes, planes), jnp.float32),
        "bn2": bn_params(keys[3], planes),
        "conv3_w": 0.1 * jax.random.normal(keys[4], (planes, Cout), jnp.float32),
        "bn3": bn_params(keys[5], Cout),
        "sc_w": 0.1 * jax.random.normal(keys[6], (Cin, Cout), jnp.float32),
        "bn_sc": bn_params(keys[7], Cout),
    }

    x = jax.random.normal(keys[8], (N, Cin, H, W), jnp.float32)

    out_nhwc = jax.block_until_ready(bottleneck_forward(x, params, stride=1))
    out_nchw = jnp.transpose(out_nhwc, (0, 3, 1, 2))

    ref = ref_forward(x, params, stride=1)
    # bf16 matmul inputs -> loosened tolerance vs the f32 reference.
    np.testing.assert_allclose(np.asarray(out_nchw), np.asarray(ref),
                               rtol=3e-2, atol=3e-2)
    print("KERNEL_OK")
</pallas_src>

<mosaic_0001>
module attributes {stable_mosaic.version = 11 : i64} {
  func.func @bottleneck_kernel(%arg0: i32, %arg1: memref<1x8x8x16xbf16, #tpu.memory_space<vmem>>, %arg2: memref<16x40xbf16, #tpu.memory_space<vmem>>, %arg3: memref<1x40xf32, #tpu.memory_space<vmem>>, %arg4: memref<72x8xbf16, #tpu.memory_space<vmem>>, %arg5: memref<1x8xf32, #tpu.memory_space<vmem>>, %arg6: memref<8x32xbf16, #tpu.memory_space<vmem>>, %arg7: memref<1x32xf32, #tpu.memory_space<vmem>>, %arg8: memref<1x8x8x32xf32, #tpu.memory_space<vmem>>, %arg9: memref<1x10x10x8xbf16, #tpu.memory_space<vmem>>) attributes {dimension_semantics = [#tpu.dimension_semantics<parallel>], iteration_bounds = array<i64: 2>, scalar_prefetch = 0 : i64, scratch_operands = 1 : i64, tpu.core_type = #tpu.core_type<tc>, window_params = [{transform_indices = @transform_0, window_bounds = array<i64: 1, 8, 8, 16>}, {pipeline_mode = #tpu.pipeline_mode<synchronous>, transform_indices = @transform_1, window_bounds = array<i64: 16, 40>}, {pipeline_mode = #tpu.pipeline_mode<synchronous>, transform_indices = @transform_2, window_bounds = array<i64: 1, 40>}, {pipeline_mode = #tpu.pipeline_mode<synchronous>, transform_indices = @transform_3, window_bounds = array<i64: 72, 8>}, {pipeline_mode = #tpu.pipeline_mode<synchronous>, transform_indices = @transform_4, window_bounds = array<i64: 1, 8>}, {pipeline_mode = #tpu.pipeline_mode<synchronous>, transform_indices = @transform_5, window_bounds = array<i64: 8, 32>}, {pipeline_mode = #tpu.pipeline_mode<synchronous>, transform_indices = @transform_6, window_bounds = array<i64: 1, 32>}, {transform_indices = @transform_7, window_bounds = array<i64: 1, 8, 8, 32>}]} {
    %c0 = arith.constant 0 : index
    %c0_0 = arith.constant 0 : index
    %c0_1 = arith.constant 0 : index
    %c0_2 = arith.constant 0 : index
    %0 = vector.load %arg1[%c0, %c0_0, %c0_1, %c0_2] : memref<1x8x8x16xbf16, #tpu.memory_space<vmem>>, vector<1x8x8x16xbf16>
    %1 = vector.shape_cast %0 : vector<1x8x8x16xbf16> to vector<64x16xbf16>
    %c0_3 = arith.constant 0 : index
    %c0_4 = arith.constant 0 : index
    %2 = vector.load %arg2[%c0_3, %c0_4] : memref<16x40xbf16, #tpu.memory_space<vmem>>, vector<16x40xbf16>
    %cst = arith.constant dense<0.000000e+00> : vector<64x40xf32>
    %3 = tpu.matmul %1, %2, %cst {dimension_numbers = #tpu.dot_dimension_numbers<[1], [0], [0], [1], [0, 0, 1, 1], [], []>} : vector<64x16xbf16>, vector<16x40xbf16>, vector<64x40xf32> -> vector<64x40xf32>
    %c0_5 = arith.constant 0 : index
    %c0_6 = arith.constant 0 : index
    %4 = vector.load %arg3[%c0_5, %c0_6] : memref<1x40xf32, #tpu.memory_space<vmem>>, vector<1x40xf32>
    %5 = vector.broadcast %4 : vector<1x40xf32> to vector<64x40xf32>
    %6 = arith.addf %3, %5 : vector<64x40xf32>
    %7 = vector.extract_strided_slice %6 {offsets = [0, 0], sizes = [64, 8], strides = [1, 1]} : vector<64x40xf32> to vector<64x8xf32>
    %cst_7 = arith.constant 0.000000e+00 : f32
    %8 = vector.broadcast %cst_7 : f32 to vector<64x8xf32>
    %9 = arith.maximumf %7, %8 : vector<64x8xf32>
    %10 = vector.extract_strided_slice %6 {offsets = [0, 8], sizes = [64, 32], strides = [1, 1]} : vector<64x40xf32> to vector<64x32xf32>
    %cst_8 = arith.constant 0.000000e+00 : bf16
    %11 = vector.broadcast %cst_8 : bf16 to vector<1x1x10x8xbf16>
    %c0_9 = arith.constant 0 : index
    %c0_10 = arith.constant 0 : index
    %c0_11 = arith.constant 0 : index
    %c0_12 = arith.constant 0 : index
    %12 = vector.load %arg9[%c0_9, %c0_10, %c0_11, %c0_12] : memref<1x10x10x8xbf16, #tpu.memory_space<vmem>>, vector<1x1x10x8xbf16>
    tpu.vector_store %arg9[%c0_9, %c0_10, %c0_11, %c0_12], %11 {strides = array<i32>} : memref<1x10x10x8xbf16, #tpu.memory_space<vmem>>, vector<1x1x10x8xbf16>,
    %cst_13 = arith.constant 0.000000e+00 : bf16
    %13 = vector.broadcast %cst_13 : bf16 to vector<1x1x10x8xbf16>
    %c0_14 = arith.constant 0 : index
    %c9 = arith.constant 9 : index
    %c0_15 = arith.constant 0 : index
    %c0_16 = arith.constant 0 : index
    %14 = vector.load %arg9[%c0_14, %c9, %c0_15, %c0_16] : memref<1x10x10x8xbf16, #tpu.memory_space<vmem>>, vector<1x1x10x8xbf16>
    tpu.vector_store %arg9[%c0_14, %c9, %c0_15, %c0_16], %13 {strides = array<i32>} : memref<1x10x10x8xbf16, #tpu.memory_space<vmem>>, vector<1x1x10x8xbf16>,
    %cst_17 = arith.constant 0.000000e+00 : bf16
    %15 = vector.broadcast %cst_17 : bf16 to vector<1x8x1x8xbf16>
    %c0_18 = arith.constant 0 : index
    %c1 = arith.constant 1 : index
    %c0_19 = arith.constant 0 : index
    %c0_20 = arith.constant 0 : index
    %16 = vector.load %arg9[%c0_18, %c1, %c0_19, %c0_20] : memref<1x10x10x8xbf16, #tpu.memory_space<vmem>>, vector<1x8x1x8xbf16>
    tpu.vector_store %arg9[%c0_18, %c1, %c0_19, %c0_20], %15 {strides = array<i32>} : memref<1x10x10x8xbf16, #tpu.memory_space<vmem>>, vector<1x8x1x8xbf16>,
    %cst_21 = arith.constant 0.000000e+00 : bf16
    %17 = vector.broadcast %cst_21 : bf16 to vector<1x8x1x8xbf16>
    %c0_22 = arith.constant 0 : index
    %c1_23 = arith.constant 1 : index
    %c9_24 = arith.constant 9 : index
    %c0_25 = arith.constant 0 : index
    %18 = vector.load %arg9[%c0_22, %c1_23, %c9_24, %c0_25] : memref<1x10x10x8xbf16, #tpu.memory_space<vmem>>, vector<1x8x1x8xbf16>
    tpu.vector_store %arg9[%c0_22, %c1_23, %c9_24, %c0_25], %17 {strides = array<i32>} : memref<1x10x10x8xbf16, #tpu.memory_space<vmem>>, vector<1x8x1x8xbf16>,
    %19 = vector.shape_cast %9 : vector<64x8xf32> to vector<1x8x8x8xf32>
    %20 = arith.truncf %19 : vector<1x8x8x8xf32> to vector<1x8x8x8xbf16>
    %c0_26 = arith.constant 0 : index
    %c1_27 = arith.constant 1 : index
    %c1_28 = arith.constant 1 : index
    %c0_29 = arith.constant 0 : index
    %21 = vector.load %arg9[%c0_26, %c1_27, %c1_28, %c0_29] : memref<1x10x10x8xbf16, #tpu.memory_space<vmem>>, vector<1x8x8x8xbf16>
    tpu.vector_store %arg9[%c0_26, %c1_27, %c1_28, %c0_29], %20 {strides = array<i32>} : memref<1x10x10x8xbf16, #tpu.memory_space<vmem>>, vector<1x8x8x8xbf16>,
    %c0_30 = arith.constant 0 : index
    %c0_31 = arith.constant 0 : index
    %c0_32 = arith.constant 0 : index
    %c0_33 = arith.constant 0 : index
    %22 = vector.load %arg9[%c0_30, %c0_31, %c0_32, %c0_33] : memref<1x10x10x8xbf16, #tpu.memory_space<vmem>>, vector<1x8x8x8xbf16>
    %23 = vector.shape_cast %22 : vector<1x8x8x8xbf16> to vector<64x8xbf16>
    %c0_34 = arith.constant 0 : index
    %c0_35 = arith.constant 0 : index
    %c1_36 = arith.constant 1 : index
    %c0_37 = arith.constant 0 : index
    %24 = vector.load %arg9[%c0_34, %c0_35, %c1_36, %c0_37] : memref<1x10x10x8xbf16, #tpu.memory_space<vmem>>, vector<1x8x8x8xbf16>
    %25 = vector.shape_cast %24 : vector<1x8x8x8xbf16> to vector<64x8xbf16>
    %c0_38 = arith.constant 0 : index
    %c0_39 = arith.constant 0 : index
    %c2 = arith.constant 2 : index
    %c0_40 = arith.constant 0 : index
    %26 = vector.load %arg9[%c0_38, %c0_39, %c2, %c0_40] : memref<1x10x10x8xbf16, #tpu.memory_space<vmem>>, vector<1x8x8x8xbf16>
    %27 = vector.shape_cast %26 : vector<1x8x8x8xbf16> to vector<64x8xbf16>
    %c0_41 = arith.constant 0 : index
    %c1_42 = arith.constant 1 : index
    %c0_43 = arith.constant 0 : index
    %c0_44 = arith.constant 0 : index
    %28 = vector.load %arg9[%c0_41, %c1_42, %c0_43, %c0_44] : memref<1x10x10x8xbf16, #tpu.memory_space<vmem>>, vector<1x8x8x8xbf16>
    %29 = vector.shape_cast %28 : vector<1x8x8x8xbf16> to vector<64x8xbf16>
    %c0_45 = arith.constant 0 : index
    %c1_46 = arith.constant 1 : index
    %c1_47 = arith.constant 1 : index
    %c0_48 = arith.constant 0 : index
    %30 = vector.load %arg9[%c0_45, %c1_46, %c1_47, %c0_48] : memref<1x10x10x8xbf16, #tpu.memory_space<vmem>>, vector<1x8x8x8xbf16>
    %31 = vector.shape_cast %30 : vector<1x8x8x8xbf16> to vector<64x8xbf16>
    %c0_49 = arith.constant 0 : index
    %c1_50 = arith.constant 1 : index
    %c2_51 = arith.constant 2 : index
    %c0_52 = arith.constant 0 : index
    %32 = vector.load %arg9[%c0_49, %c1_50, %c2_51, %c0_52] : memref<1x10x10x8xbf16, #tpu.memory_space<vmem>>, vector<1x8x8x8xbf16>
    %33 = vector.shape_cast %32 : vector<1x8x8x8xbf16> to vector<64x8xbf16>
    %c0_53 = arith.constant 0 : index
    %c2_54 = arith.constant 2 : index
    %c0_55 = arith.constant 0 : index
    %c0_56 = arith.constant 0 : index
    %34 = vector.load %arg9[%c0_53, %c2_54, %c0_55, %c0_56] : memref<1x10x10x8xbf16, #tpu.memory_space<vmem>>, vector<1x8x8x8xbf16>
    %35 = vector.shape_cast %34 : vector<1x8x8x8xbf16> to vector<64x8xbf16>
    %c0_57 = arith.constant 0 : index
    %c2_58 = arith.constant 2 : index
    %c1_59 = arith.constant 1 : index
    %c0_60 = arith.constant 0 : index
    %36 = vector.load %arg9[%c0_57, %c2_58, %c1_59, %c0_60] : memref<1x10x10x8xbf16, #tpu.memory_space<vmem>>, vector<1x8x8x8xbf16>
    %37 = vector.shape_cast %36 : vector<1x8x8x8xbf16> to vector<64x8xbf16>
    %c0_61 = arith.constant 0 : index
    %c2_62 = arith.constant 2 : index
    %c2_63 = arith.constant 2 : index
    %c0_64 = arith.constant 0 : index
    %38 = vector.load %arg9[%c0_61, %c2_62, %c2_63, %c0_64] : memref<1x10x10x8xbf16, #tpu.memory_space<vmem>>, vector<1x8x8x8xbf16>
    %39 = vector.shape_cast %38 : vector<1x8x8x8xbf16> to vector<64x8xbf16>
    %40 = tpu.concatenate %23, %25, %27, %29, %31, %33, %35, %37, %39 in 1 : vector<64x8xbf16>, vector<64x8xbf16>, vector<64x8xbf16>, vector<64x8xbf16>, vector<64x8xbf16>, vector<64x8xbf16>, vector<64x8xbf16>, vector<64x8xbf16>, vector<64x8xbf16> -> vector<64x72xbf16>
    %c0_65 = arith.constant 0 : index
    %c0_66 = arith.constant 0 : index
    %41 = vector.load %arg4[%c0_65, %c0_66] : memref<72x8xbf16, #tpu.memory_space<vmem>>, vector<72x8xbf16>
    %cst_67 = arith.constant dense<0.000000e+00> : vector<64x8xf32>
    %42 = tpu.matmul %40, %41, %cst_67 {dimension_numbers = #tpu.dot_dimension_numbers<[1], [0], [0], [1], [0, 0, 1, 1], [], []>} : vector<64x72xbf16>, vector<72x8xbf16>, vector<64x8xf32> -> vector<64x8xf32>
    %c0_68 = arith.constant 0 : index
    %c0_69 = arith.constant 0 : index
    %43 = vector.load %arg5[%c0_68, %c0_69] : memref<1x8xf32, #tpu.memory_space<vmem>>, vector<1x8xf32>
    %44 = vector.broadcast %43 : vector<1x8xf32> to vector<64x8xf32>
    %45 = arith.addf %42, %44 : vector<64x8xf32>
    %cst_70 = arith.constant 0.000000e+00 : f32
    %46 = vector.broadcast %cst_70 : f32 to vector<64x8xf32>
    %47 = arith.maximumf %45, %46 : vector<64x8xf32>
    %48 = arith.truncf %47 : vector<64x8xf32> to vector<64x8xbf16>
    %c0_71 = arith.constant 0 : index
    %c0_72 = arith.constant 0 : index
    %49 = vector.load %arg6[%c0_71, %c0_72] : memref<8x32xbf16, #tpu.memory_space<vmem>>, vector<8x32xbf16>
    %cst_73 = arith.constant dense<0.000000e+00> : vector<64x32xf32>
    %50 = tpu.matmul %48, %49, %cst_73 {dimension_numbers = #tpu.dot_dimension_numbers<[1], [0], [0], [1], [0, 0, 1, 1], [], []>} : vector<64x8xbf16>, vector<8x32xbf16>, vector<64x32xf32> -> vector<64x32xf32>
    %c0_74 = arith.constant 0 : index
    %c0_75 = arith.constant 0 : index
    %51 = vector.load %arg7[%c0_74, %c0_75] : memref<1x32xf32, #tpu.memory_space<vmem>>, vector<1x32xf32>
    %52 = vector.broadcast %51 : vector<1x32xf32> to vector<64x32xf32>
    %53 = arith.addf %50, %52 : vector<64x32xf32>
    %54 = arith.addf %53, %10 : vector<64x32xf32>
    %cst_76 = arith.constant 0.000000e+00 : f32
    %55 = vector.broadcast %cst_76 : f32 to vector<64x32xf32>
    %56 = arith.maximumf %54, %55 : vector<64x32xf32>
    %57 = vector.shape_cast %56 : vector<64x32xf32> to vector<1x8x8x32xf32>
    %c0_77 = arith.constant 0 : index
    %c0_78 = arith.constant 0 : index
    %c0_79 = arith.constant 0 : index
    %c0_80 = arith.constant 0 : index
    %58 = vector.load %arg8[%c0_77, %c0_78, %c0_79, %c0_80] : memref<1x8x8x32xf32, #tpu.memory_space<vmem>>, vector<1x8x8x32xf32>
    tpu.vector_store %arg8[%c0_77, %c0_78, %c0_79, %c0_80], %57 {strides = array<i32>} : memref<1x8x8x32xf32, #tpu.memory_space<vmem>>, vector<1x8x8x32xf32>,
    return
  }
  func.func @transform_0(%arg0: i32) -> (i32, i32, i32, i32) {
    %c0_i32 = arith.constant 0 : i32
    %c0_i32_0 = arith.constant 0 : i32
    %c0_i32_1 = arith.constant 0 : i32
    %c0_i32_2 = arith.constant 0 : i32
    return %arg0, %c0_i32, %c0_i32_0, %c0_i32_1 : i32, i32, i32, i32
  }
  func.func @transform_1(%arg0: i32) -> (i32, i32) {
    %c0_i32 = arith.constant 0 : i32
    %c0_i32_0 = arith.constant 0 : i32
    %c0_i32_1 = arith.constant 0 : i32
    return %c0_i32, %c0_i32_0 : i32, i32
  }
  func.func @transform_2(%arg0: i32) -> (i32, i32) {
    %c0_i32 = arith.constant 0 : i32
    %c0_i32_0 = arith.constant 0 : i32
    %c0_i32_1 = arith.constant 0 : i32
    return %c0_i32, %c0_i32_0 : i32, i32
  }
  func.func @transform_3(%arg0: i32) -> (i32, i32) {
    %c0_i32 = arith.constant 0 : i32
    %c0_i32_0 = arith.constant 0 : i32
    %c0_i32_1 = arith.constant 0 : i32
    return %c0_i32, %c0_i32_0 : i32, i32
  }
  func.func @transform_4(%arg0: i32) -> (i32, i32) {
    %c0_i32 = arith.constant 0 : i32
    %c0_i32_0 = arith.constant 0 : i32
    %c0_i32_1 = arith.constant 0 : i32
    return %c0_i32, %c0_i32_0 : i32, i32
  }
  func.func @transform_5(%arg0: i32) -> (i32, i32) {
    %c0_i32 = arith.constant 0 : i32
    %c0_i32_0 = arith.constant 0 : i32
    %c0_i32_1 = arith.constant 0 : i32
    return %c0_i32, %c0_i32_0 : i32, i32
  }
  func.func @transform_6(%arg0: i32) -> (i32, i32) {
    %c0_i32 = arith.constant 0 : i32
    %c0_i32_0 = arith.constant 0 : i32
    %c0_i32_1 = arith.constant 0 : i32
    return %c0_i32, %c0_i32_0 : i32, i32
  }
  func.func @transform_7(%arg0: i32) -> (i32, i32, i32, i32) {
    %c0_i32 = arith.constant 0 : i32
    %c0_i32_0 = arith.constant 0 : i32
    %c0_i32_1 = arith.constant 0 : i32
    %c0_i32_2 = arith.constant 0 : i32
    return %arg0, %c0_i32, %c0_i32_0, %c0_i32_1 : i32, i32, i32, i32
  }
}

</mosaic_0001>

<llo_original>
// kernel: tpu_custom_call.1
$region0: #{tpu_custom_call.1}
  #allocation0 [shape = 'u32[]', space=smem, size = 0x4, offset = 0x4, fixed_abs, tag = 'smem constant byte address 0x4 - core index']
  #allocation1 [shape = 'u32[144,128]{1,0:T(1,128)}', space=vmem, size = 0x12000, scoped, tag = 'internal scratch']
  #allocation2 [shape = 'bf16[1,10,10,8]{3,2,1,0:T(8,128)(2,1)}', space=vmem, size = 0xa000, scoped, tag = 'scratch operand']
  %s0 = inlined_call_operand.hbm [shape: bf16[2,8,8,16], index: 0, kind: input, shape index: {}]
  %s1 = inlined_call_operand.vmem [shape: bf16[16,40], index: 1, kind: input, shape index: {}]
  %s2 = inlined_call_operand.vmem [shape: f32[1,40], index: 2, kind: input, shape index: {}]
  %s3 = inlined_call_operand.vmem [shape: bf16[72,8], index: 3, kind: input, shape index: {}]
  %s4 = inlined_call_operand.vmem [shape: f32[1,8], index: 4, kind: input, shape index: {}]
  %s5 = inlined_call_operand.vmem [shape: bf16[8,32], index: 5, kind: input, shape index: {}]
  %s6 = inlined_call_operand.vmem [shape: f32[1,32], index: 6, kind: input, shape index: {}]
  %s7 = inlined_call_operand.hbm [shape: f32[2,8,8,32], index: 7, kind: output, shape index: {}]
  %s8 = sld [smem:[#allocation0]]
  $region65: #{tpu_custom_call.1} parent=0
    _
  %s10 = ssub.s32 1, %s8
  %s11 = scalar_select 0, %s10, %s8
  $region1: #{tpu_custom_call.1} parent=0
    #allocation3 [shape = 'u8[32768]{0}', space=vmem, size = 0x8000, scoped, tag = 'input window, operand 0']
    #allocation4 [shape = 's32[2]{0}', space=sflag, size = 0x8, scoped, tag = 'scoped memory for tpu_custom_call.1']
    #allocation5 [shape = 's32[2]{0}', space=sflag, size = 0x8, scoped, tag = 'scoped memory for tpu_custom_call.1']
    #allocation6 [shape = 'u8[65536]{0}', space=vmem, size = 0x10000, scoped, tag = 'output window, operand 0']
    %12 = vsyncpa [#allocation4], 0
    %s13 = scalar_lea.sflag [#allocation4], 1
    %14 = vsyncpa %s13, 0
    %15 = vsyncpa [#allocation5], 0
    %s16 = scalar_lea.sflag [#allocation5], 1
    %17 = vsyncpa %s16, 0
    loop: start=0, step=1, limit=4
    $region2: #{tpu_custom_call.1} parent=1 // loop_pre_header
      _
    $region3: #{tpu_custom_call.1} parent=1 // loop_header
      %s19 = sphi 0, %s23
      %p20 = scmp.ge.s32.totalorder %s19, 4
      %s29 = sphi 0, %s31
      %s32 = sphi 0, %s29
      %s33 = sphi 0, %s32
      %s49 = sphi 0, %s33
      %s53 = sphi 0, %s53
      %s55 = sphi 0, %s53
      %s56 = sphi 0, %s55
      %s70 = sphi 0, %s56
      %s74 = sphi 0, %s74
      %s76 = sphi 0, %s74
      %s77 = sphi 0, %s76
      %s91 = sphi 0, %s77
      %s95 = sphi 0, %s95
      %s97 = sphi 0, %s95
      %s98 = sphi 0, %s97
      %s112 = sphi 0, %s98
      %s116 = sphi 0, %s116
      %s118 = sphi 0, %s116
      %s119 = sphi 0, %s118
      %s133 = sphi 0, %s119
      %s137 = sphi 0, %s137
      %s139 = sphi 0, %s137
      %s140 = sphi 0, %s139
      %s154 = sphi 0, %s140
      %s158 = sphi 0, %s158
      %s160 = sphi 0, %s158
      %s161 = sphi 0, %s160
      %s175 = sphi 0, %s161
      %s181 = sphi 0, %s183
      %s184 = sphi 0, %s181
      %s185 = sphi 0, %s184
      %s201 = sphi 0, %s185
    $region4: #{tpu_custom_call.1} parent=1 // loop_header_branch
      %22 = sbr.rel (%p20) target = $region8
    $region5: #{tpu_custom_call.1} parent=1 // loop_body
      %s24 = ssub.s32 %s19, 1
      %s25 = ssub.s32 %s19, 2
      %s26 = sadd.s32 %s19, 1
      %s27 = ssub.s32 %s19, %s26
      %p28 = scmp.eq.s32.totalorder %s27, 0
      %s30 = sadd.s32 %s29, 1
      %s31 = scalar_select %p28, %s29, %s30
      %p34 = pneg %p28
      %p35 = scmp.eq.s32.totalorder %s19, 1
      %p36 = por %p34, %p35
      %p37 = scmp.ne.s32.totalorder %s29, %s32
      %p38 = scmp.eq.s32.totalorder %s19, 0
      %p39 = por %p37, %p38
      %p40 = scmp.ne.s32.totalorder %s29, %s32
      %p41 = scmp.eq.s32.totalorder %s24, 1
      %p42 = por %p40, %p41
      %p43 = scmp.ne.s32.totalorder %s32, %s33
      %p44 = scmp.eq.s32.totalorder %s24, 0
      %p45 = por %p43, %p44
      %p46 = scmp.ne.s32.totalorder %s32, %s33
      %p47 = scmp.eq.s32.totalorder %s25, 1
      %p48 = por %p46, %p47
      %p50 = scmp.ne.s32.totalorder %s33, %s49
      %p51 = scmp.eq.s32.totalorder %s25, 0
      %p52 = por %p50, %p51
      %s54 = sadd.s32 %s53, 1
      %p57 = scmp.eq.s32.totalorder %s19, 1
      %p58 = scmp.ne.s32.totalorder %s53, %s55
      %p59 = scmp.eq.s32.totalorder %s19, 0
      %p60 = por %p58, %p59
      %p61 = scmp.ne.s32.totalorder %s53, %s55
      %p62 = scmp.eq.s32.totalorder %s24, 1
      %p63 = por %p61, %p62
      %p64 = scmp.ne.s32.totalorder %s55, %s56
      %p65 = scmp.eq.s32.totalorder %s24, 0
      %p66 = por %p64, %p65
      %p67 = scmp.ne.s32.totalorder %s55, %s56
      %p68 = scmp.eq.s32.totalorder %s25, 1
      %p69 = por %p67, %p68
      %p71 = scmp.ne.s32.totalorder %s56, %s70
      %p72 = scmp.eq.s32.totalorder %s25, 0
      %p73 = por %p71, %p72
      %s75 = sadd.s32 %s74, 1
      %p78 = scmp.eq.s32.totalorder %s19, 1
      %p79 = scmp.ne.s32.totalorder %s74, %s76
      %p80 = scmp.eq.s32.totalorder %s19, 0
      %p81 = por %p79, %p80
      %p82 = scmp.ne.s32.totalorder %s74, %s76
      %p83 = scmp.eq.s32.totalorder %s24, 1
      %p84 = por %p82, %p83
      %p85 = scmp.ne.s32.totalorder %s76, %s77
      %p86 = scmp.eq.s32.totalorder %s24, 0
      %p87 = por %p85, %p86
      %p88 = scmp.ne.s32.totalorder %s76, %s77
      %p89 = scmp.eq.s32.totalorder %s25, 1
      %p90 = por %p88, %p89
      %p92 = scmp.ne.s32.totalorder %s77, %s91
      %p93 = scmp.eq.s32.totalorder %s25, 0
      %p94 = por %p92, %p93
      %s96 = sadd.s32 %s95, 1
      %p99 = scmp.eq.s32.totalorder %s19, 1
      %p100 = scmp.ne.s32.totalorder %s95, %s97
      %p101 = scmp.eq.s32.totalorder %s19, 0
      %p102 = por %p100, %p101
      %p103 = scmp.ne.s32.totalorder %s95, %s97
      %p104 = scmp.eq.s32.totalorder %s24, 1
      %p105 = por %p103, %p104
      %p106 = scmp.ne.s32.totalorder %s97, %s98
      %p107 = scmp.eq.s32.totalorder %s24, 0
      %p108 = por %p106, %p107
      %p109 = scmp.ne.s32.totalorder %s97, %s98
      %p110 = scmp.eq.s32.totalorder %s25, 1
      %p111 = por %p109, %p110
      %p113 = scmp.ne.s32.totalorder %s98, %s112
      %p114 = scmp.eq.s32.totalorder %s25, 0
      %p115 = por %p113, %p114
      %s117 = sadd.s32 %s116, 1
      %p120 = scmp.eq.s32.totalorder %s19, 1
      %p121 = scmp.ne.s32.totalorder %s116, %s118
      %p122 = scmp.eq.s32.totalorder %s19, 0
      %p123 = por %p121, %p122
      %p124 = scmp.ne.s32.totalorder %s116, %s118
      %p125 = scmp.eq.s32.totalorder %s24, 1
      %p126 = por %p124, %p125
      %p127 = scmp.ne.s32.totalorder %s118, %s119
      %p128 = scmp.eq.s32.totalorder %s24, 0
      %p129 = por %p127, %p128
      %p130 = scmp.ne.s32.totalorder %s118, %s119
      %p131 = scmp.eq.s32.totalorder %s25, 1
      %p132 = por %p130, %p131
      %p134 = scmp.ne.s32.totalorder %s119, %s133
      %p135 = scmp.eq.s32.totalorder %s25, 0
      %p136 = por %p134, %p135
      %s138 = sadd.s32 %s137, 1
      %p141 = scmp.eq.s32.totalorder %s19, 1
      %p142 = scmp.ne.s32.totalorder %s137, %s139
      %p143 = scmp.eq.s32.totalorder %s19, 0
      %p144 = por %p142, %p143
      %p145 = scmp.ne.s32.totalorder %s137, %s139
      %p146 = scmp.eq.s32.totalorder %s24, 1
      %p147 = por %p145, %p146
      %p148 = scmp.ne.s32.totalorder %s139, %s140
      %p149 = scmp.eq.s32.totalorder %s24, 0
      %p150 = por %p148, %p149
      %p151 = scmp.ne.s32.totalorder %s139, %s140
      %p152 = scmp.eq.s32.totalorder %s25, 1
      %p153 = por %p151, %p152
      %p155 = scmp.ne.s32.totalorder %s140, %s154
      %p156 = scmp.eq.s32.totalorder %s25, 0
      %p157 = por %p155, %p156
      %s159 = sadd.s32 %s158, 1
      %p162 = scmp.eq.s32.totalorder %s19, 1
      %p163 = scmp.ne.s32.totalorder %s158, %s160
      %p164 = scmp.eq.s32.totalorder %s19, 0
      %p165 = por %p163, %p164
      %p166 = scmp.ne.s32.totalorder %s158, %s160
      %p167 = scmp.eq.s32.totalorder %s24, 1
      %p168 = por %p166, %p167
      %p169 = scmp.ne.s32.totalorder %s160, %s161
      %p170 = scmp.eq.s32.totalorder %s24, 0
      %p171 = por %p169, %p170
      %p172 = scmp.ne.s32.totalorder %s160, %s161
      %p173 = scmp.eq.s32.totalorder %s25, 1
      %p174 = por %p172, %p173
      %p176 = scmp.ne.s32.totalorder %s161, %s175
      %p177 = scmp.eq.s32.totalorder %s25, 0
      %p178 = por %p176, %p177
      %s179 = ssub.s32 %s19, %s26
      %p180 = scmp.eq.s32.totalorder %s179, 0
      %s182 = sadd.s32 %s181, 1
      %s183 = scalar_select %p180, %s181, %s182
      %p186 = pneg %p180
      %p187 = scmp.eq.s32.totalorder %s19, 1
      %p188 = por %p186, %p187
      %p189 = scmp.ne.s32.totalorder %s181, %s184
      %p190 = scmp.eq.s32.totalorder %s19, 0
      %p191 = por %p189, %p190
      %p192 = scmp.ne.s32.totalorder %s181, %s184
      %p193 = scmp.eq.s32.totalorder %s24, 1
      %p194 = por %p192, %p193
      %p195 = scmp.ne.s32.totalorder %s184, %s185
      %p196 = scmp.eq.s32.totalorder %s24, 0
      %p197 = por %p195, %p196
      %p198 = scmp.ne.s32.totalorder %s184, %s185
      %p199 = scmp.eq.s32.totalorder %s25, 1
      %p200 = por %p198, %p199
      %p202 = scmp.ne.s32.totalorder %s185, %s201
      %p203 = scmp.eq.s32.totalorder %s25, 0
      %p204 = por %p202, %p203
      %p205 = scmp.le.s32.totalorder 1, %s19
      %p206 = scmp.lt.s32.totalorder %s19, 3
      %p207 = pnand %p205, %p206
      %p208 = pneg %p207
      // Predicated region
      $region9: #{tpu_custom_call.1} parent=5 // pred_check
        _
      $region10: #{tpu_custom_call.1} parent=5 // pred_check_branch
        %210 = sbr.rel (%p207) target = $region12
      $region11: #{tpu_custom_call.1} parent=5 // pred_region
        %s211 = ssub.s32 %s19, 1
        // Predicated region
        $region13: #{tpu_custom_call.1} parent=11 // pred_check
          %p212 = pneg %p66
        $region14: #{tpu_custom_call.1} parent=11 // pred_check_branch
          %214 = sbr.rel (%p212) target = $region16
        $region15: #{tpu_custom_call.1} parent=11 // pred_region
          _
        $region16: #{tpu_custom_call.1} parent=11 // pred_fallthru
          _
        // Predicated region
        $region17: #{tpu_custom_call.1} parent=11 // pred_check
          %p215 = pneg %p87
        $region18: #{tpu_custom_call.1} parent=11 // pred_check_branch
          %217 = sbr.rel (%p215) target = $region20
        $region19: #{tpu_custom_call.1} parent=11 // pred_region
          _
        $region20: #{tpu_custom_call.1} parent=11 // pred_fallthru
          _
        // Predicated region
        $region21: #{tpu_custom_call.1} parent=11 // pred_check
          %p218 = pneg %p108
        $region22: #{tpu_custom_call.1} parent=11 // pred_check_branch
          %220 = sbr.rel (%p218) target = $region24
        $region23: #{tpu_custom_call.1} parent=11 // pred_region
          _
        $region24: #{tpu_custom_call.1} parent=11 // pred_fallthru
          _
        // Predicated region
        $region25: #{tpu_custom_call.1} parent=11 // pred_check
          %p221 = pneg %p129
        $region26: #{tpu_custom_call.1} parent=11 // pred_check_branch
          %223 = sbr.rel (%p221) target = $region28
        $region27: #{tpu_custom_call.1} parent=11 // pred_region
          _
        $region28: #{tpu_custom_call.1} parent=11 // pred_fallthru
          _
        // Predicated region
        $region29: #{tpu_custom_call.1} parent=11 // pred_check
          %p224 = pneg %p150
        $region30: #{tpu_custom_call.1} parent=11 // pred_check_branch
          %226 = sbr.rel (%p224) target = $region32
        $region31: #{tpu_custom_call.1} parent=11 // pred_region
          _
        $region32: #{tpu_custom_call.1} parent=11 // pred_fallthru
          _
        // Predicated region
        $region33: #{tpu_custom_call.1} parent=11 // pred_check
          %p227 = pneg %p171
        $region34: #{tpu_custom_call.1} parent=11 // pred_check_branch
          %229 = sbr.rel (%p227) target = $region36
        $region35: #{tpu_custom_call.1} parent=11 // pred_region
          _
        $region36: #{tpu_custom_call.1} parent=11 // pred_fallthru
          _
      $region12: #{tpu_custom_call.1} parent=5 // pred_fallthru
        _
      %p230 = scmp.lt.s32.totalorder %s19, 2
      // Predicated region
      $region37: #{tpu_custom_call.1} parent=5 // pred_check
        %p231 = pneg %p230
      $region38: #{tpu_custom_call.1} parent=5 // pred_check_branch
        %233 = sbr.rel (%p231) target = $region40
      $region39: #{tpu_custom_call.1} parent=5 // pred_region
        // Predicated region
        $region41: #{tpu_custom_call.1} parent=39 // pred_check
          %p234 = pneg %p39
        $region42: #{tpu_custom_call.1} parent=39 // pred_check_branch
          %236 = sbr.rel (%p234) target = $region44
        $region43: #{tpu_custom_call.1} parent=39 // pred_region
          %s237 = sand.u32 %s29, 1
          %s238 = scalar_lea.sflag [#allocation4], %s237
          %s239 = sand.u32 %s29, 1
          %s240 = smul.addr %s239, 32
          %s241 = scalar_lea.vmem [#allocation3], %s240
          %s243 = ssub.s32 512, 512
          %244 = vsyncadd %s238, %s243
          %s245 = smul.addr %s19, 8
          %s246 = smul.addr %s245, 64
          %s247 = scalar_lea.hbm %s0, %s246
          %s248 = sshll.u32 %s241, 4
          %s249 = int_to_ptr.vmem [resolvable:$true] %s248
          %254 = dma.hbm_to_vmem [thread:$0]  %s247, 512, %s249, %s238, 64, 64, 4
        $region44: #{tpu_custom_call.1} parent=39 // pred_fallthru
          _
      $region40: #{tpu_custom_call.1} parent=5 // pred_fallthru
        _
      %p255 = scmp.le.s32.totalorder 1, %s19
      %p256 = scmp.lt.s32.totalorder %s19, 3
      %p257 = pnand %p255, %p256
      %p258 = pneg %p257
      // Predicated region
      $region45: #{tpu_custom_call.1} parent=5 // pred_check
        _
      $region46: #{tpu_custom_call.1} parent=5 // pred_check_branch
        %260 = sbr.rel (%p257) target = $region48
      $region47: #{tpu_custom_call.1} parent=5 // pred_region
        %s261 = ssub.s32 %s19, 1
        %s262 = sand.u32 %s32, 1
        %s263 = scalar_lea.sflag [#allocation4], %s262
        %s264 = sand.u32 %s32, 1
        %s265 = smul.addr %s264, 32
        %s266 = scalar_lea.vmem [#allocation3], %s265
        // Predicated region
        $region49: #{tpu_custom_call.1} parent=47 // pred_check
          %p267 = pneg %p45
        $region50: #{tpu_custom_call.1} parent=47 // pred_check_branch
          %269 = sbr.rel (%p267) target = $region52
        $region51: #{tpu_custom_call.1} parent=47 // pred_region
          %270 = dma.done %s263, 512
        $region52: #{tpu_custom_call.1} parent=47 // pred_fallthru
          _
        %s271 = sand.u32 %s32, 1
        %s272 = scalar_lea.sflag [#allocation4], %s271
        %s273 = sand.u32 %s32, 1
        %s274 = smul.addr %s273, 32
        %s275 = scalar_lea.vmem [#allocation3], %s274
        %p276 = pneg %p45
        %p277 = pneg %p42
        %p278 = pneg %p66
        %p279 = pneg %p63
        %p280 = pneg %p87
        %p281 = pneg %p84
        %p282 = pneg %p108
        %p283 = pneg %p105
        %p284 = pneg %p129
        %p285 = pneg %p126
        %p286 = pneg %p150
        %p287 = pneg %p147
        %p288 = pneg %p171
        %p289 = pneg %p168
        %p290 = pneg %p197
        %p291 = pneg %p194
        %s292 = sand.u32 %s184, 1
        %s293 = scalar_lea.sflag [#allocation5], %s292
        %s294 = sand.u32 %s184, 1
        %s295 = smul.addr %s294, 64
        %s296 = scalar_lea.vmem [#allocation6], %s295
        %v298 = vld [vmem:[%s266] sm:$0xf]
        %v299 = vld [vmem:[%s266 + $0x4] sm:$0xf]
        %v300 = vld [vmem:[%s266 + $0x8] sm:$0xf]
        %v301 = vld [vmem:[%s266 + $0xc] sm:$0xf]
        %v302 = vld [vmem:[%s266 + $0x10] sm:$0xf]
        %v303 = vld [vmem:[%s266 + $0x14] sm:$0xf]
        %v304 = vld [vmem:[%s266 + $0x18] sm:$0xf]
        %v305 = vld [vmem:[%s266 + $0x1c] sm:$0xf]
        %v306 = vld [vmem:[%s1] sm:$0xf]
        %v307 = vld [vmem:[%s1 + $0x4] sm:$0xf]
        %v308 = vld [vmem:[%s2] sm:$0x1]
        %v310 = vlaneseq
        %v311 = vshrl.u32 %v310, 7
        %v312 = vsub.s32 0, %v311
        %v313 = vrot.slane %v308, %v312
        %v323 = vunpack.c.l.b16 %v298
        %v324 = vunpack.c.l.b16 %v299
        %v325 = vunpack.c.l.b16 %v300
        %v326 = vunpack.c.l.b16 %v301
        %v327 = vunpack.c.l.b16 %v302
        %v328 = vunpack.c.l.b16 %v303
        %v329 = vunpack.c.l.b16 %v304
        %v330 = vunpack.c.l.b16 %v305
        %v331 = vpack.c.b16 %v324, %v323
        %v332 = vpack.c.b16 %v326, %v325
        %v333 = vpack.c.b16 %v328, %v327
        %v334 = vpack.c.b16 %v330, %v329
        %v337 = vunpack.c.l.b16 %v306
        %v338 = vunpack.c.l.b16 %v307
        %v339 = vpack.c.b16 %v338, %v337
        %vm341 = vcmask 130048
        %v343 = vsel %vm341, %v331, 0
        %v346 = vsel %vm341, %v332, 0
        %v349 = vsel %vm341, %v333, 0
        %v352 = vsel %vm341, %v334, 0
        %354 = vmatprep.subr.bf16.mxu0 0
        %355 = vmatpush1.bf16.msra.mxu0 0
        %356 = vmatprep.subr.bf16.mxu0 0
        %357 = vmatpush1.bf16.msra.mxu0 0
        %358 = vmatprep.subr.bf16.mxu0 0
        %359 = vmatpush1.bf16.msra.mxu0 0
        %360 = vmatprep.subr.bf16.mxu0 0
        %361 = vmatpush1.bf16.msra.mxu0 0
        %362 = vmatprep.subr.bf16.mxu0 0
        %363 = vmatpush1.bf16.msra.mxu0 0
        %364 = vmatprep.subr.bf16.mxu0 0
        %365 = vmatpush1.bf16.msra.mxu0 0
        %366 = vmatprep.subr.bf16.mxu0 0
        %367 = vmatpush1.bf16.msra.mxu0 0
        %368 = vmatprep.subr.bf16.mxu0 0
        %369 = vmatpush1.bf16.msra.mxu0 %v339
        %370 = vmatprep.subr.bf16.mxu0 0
        %371 = vmatpush2.bf16.msra.mxu0 0
        %372 = vmatprep.subr.bf16.mxu0 0
        %373 = vmatpush2.bf16.msra.mxu0 0
        %374 = vmatprep.subr.bf16.mxu0 0
        %375 = vmatpush2.bf16.msra.mxu0 0
        %376 = vmatprep.subr.bf16.mxu0 0
        %377 = vmatpush2.bf16.msra.mxu0 0
        %378 = vmatprep.subr.bf16.mxu0 0
        %379 = vmatpush2.bf16.msra.mxu0 0
        %380 = vmatprep.subr.bf16.mxu0 0
        %381 = vmatpush2.bf16.msra.mxu0 0
        %382 = vmatprep.subr.bf16.mxu0 0
        %383 = vmatpush2.bf16.msra.mxu0 0
        %384 = vmatprep.subr.bf16.mxu0 0
        %385 = vmatpush2.bf16.msra.mxu0 0
        %386 = vmatprep.mubr.bf16.mxu0 0
        %387 = vmatmul.mubr.bf16.gmra.mxu0 %v343
        %v388 = vpop.f32.mrf.mxu0
        %v389 = vadd.f32 %v313, %v388
        %v390 = vpop.f32.mrf.mxu0
        %v391 = vpop.f32.mrf.mxu0
        %v392 = vadd.f32 %v313, %v391
        %v393 = vpop.f32.mrf.mxu0
        %394 = vmatprep.mubr.bf16.mxu0 0
        %395 = vmatmul.mubr.bf16.gmra.mxu0 %v346
        %v396 = vpop.f32.mrf.mxu0
        %v397 = vadd.f32 %v313, %v396
        %v398 = vpop.f32.mrf.mxu0
        %v399 = vpop.f32.mrf.mxu0
        %v400 = vadd.f32 %v313, %v399
        %v401 = vpop.f32.mrf.mxu0
        %402 = vmatprep.mubr.bf16.mxu0 0
        %403 = vmatmul.mubr.bf16.gmra.mxu0 %v349
        %v404 = vpop.f32.mrf.mxu0
        %v405 = vadd.f32 %v313, %v404
        %v406 = vpop.f32.mrf.mxu0
        %v407 = vpop.f32.mrf.mxu0
        %v408 = vadd.f32 %v313, %v407
        %v409 = vpop.f32.mrf.mxu0
        %410 = vmatprep.mubr.bf16.mxu0 0
        %411 = vmatmul.mubr.bf16.gmra.mxu0 %v352
        %v412 = vpop.f32.mrf.mxu0
        %v413 = vadd.f32 %v313, %v412
        %v414 = vpop.f32.mrf.mxu0
        %v415 = vpop.f32.mrf.mxu0
        %v416 = vadd.f32 %v313, %v415
        %v417 = vpop.f32.mrf.mxu0
        %418 = vdwg.mxu0
        %v419 = vmax.f32 %v389, 0.0
        %v420 = vmax.f32 %v392, 0.0
        %v421 = vmax.f32 %v397, 0.0
        %v422 = vmax.f32 %v400, 0.0
        %v423 = vmax.f32 %v405, 0.0
        %v424 = vmax.f32 %v408, 0.0
        %v425 = vmax.f32 %v413, 0.0
        %v426 = vmax.f32 %v416, 0.0
        %vm427 = vcmask 60416
        %428 = vst.msk [vmem:[#allocation2] sm:$0xf] %vm427, 0
        %vm429 = vcmask 57344
        %430 = vst.msk [vmem:[#allocation2 + $0x4] sm:$0x1] %vm429, 0
        %s431 = scalar_lea.vmem [#allocation2], 72
        %432 = vst.msk [vmem:[%s431] sm:$0xf] %vm427, 0
        %433 = vst.msk [vmem:[%s431 + $0x4] sm:$0x1] %vm429, 0
        %s434 = scalar_lea.vmem [#allocation2], 8
        %vm435 = vcmask 57344
        %vm436 = vsmask.f32 256
        %vm437 = vmand %vm435, %vm436
        %v438 = vld [vmem:[%s434] sm:$0x1]
        %v439 = vsel %vm437, 0, %v438
        %440 = vst [vmem:[%s434] sm:$0x1] %v439
        %v441 = vld [vmem:[%s434 + $0x8] sm:$0x1]
        %v442 = vsel %vm437, 0, %v441
        %443 = vst [vmem:[%s434 + $0x8] sm:$0x1] %v442
        %v444 = vld [vmem:[%s434 + $0x10] sm:$0x1]
        %v445 = vsel %vm437, 0, %v444
        %446 = vst [vmem:[%s434 + $0x10] sm:$0x1] %v445
        %v447 = vld [vmem:[%s434 + $0x18] sm:$0x1]
        %v448 = vsel %vm437, 0, %v447
        %449 = vst [vmem:[%s434 + $0x18] sm:$0x1] %v448
        %v450 = vld [vmem:[%s434 + $0x20] sm:$0x1]
        %v451 = vsel %vm437, 0, %v450
        %452 = vst [vmem:[%s434 + $0x20] sm:$0x1] %v451
        %v453 = vld [vmem:[%s434 + $0x28] sm:$0x1]
        %v454 = vsel %vm437, 0, %v453
        %455 = vst [vmem:[%s434 + $0x28] sm:$0x1] %v454
        %v456 = vld [vmem:[%s434 + $0x30] sm:$0x1]
        %v457 = vsel %vm437, 0, %v456
        %458 = vst [vmem:[%s434 + $0x30] sm:$0x1] %v457
        %v459 = vld [vmem:[%s434 + $0x38] sm:$0x1]
        %v460 = vsel %vm437, 0, %v459
        %461 = vst [vmem:[%s434 + $0x38] sm:$0x1] %v460
        %vm462 = vsmask.f32 7938
        %vm463 = vmand %vm435, %vm462
        %v464 = vld [vmem:[%s434 + $0x4] sm:$0x1]
        %v465 = vsel %vm463, 0, %v464
        %466 = vst [vmem:[%s434 + $0x4] sm:$0x1] %v465
        %v467 = vld [vmem:[%s434 + $0xc] sm:$0x1]
        %v468 = vsel %vm463, 0, %v467
        %469 = vst [vmem:[%s434 + $0xc] sm:$0x1] %v468
        %v470 = vld [vmem:[%s434 + $0x14] sm:$0x1]
        %v471 = vsel %vm463, 0, %v470
        %472 = vst [vmem:[%s434 + $0x14] sm:$0x1] %v471
        %v473 = vld [vmem:[%s434 + $0x1c] sm:$0x1]
        %v474 = vsel %vm463, 0, %v473
        %475 = vst [vmem:[%s434 + $0x1c] sm:$0x1] %v474
        %v476 = vld [vmem:[%s434 + $0x24] sm:$0x1]
        %v477 = vsel %vm463, 0, %v476
        %478 = vst [vmem:[%s434 + $0x24] sm:$0x1] %v477
        %v479 = vld [vmem:[%s434 + $0x2c] sm:$0x1]
        %v480 = vsel %vm463, 0, %v479
        %481 = vst [vmem:[%s434 + $0x2c] sm:$0x1] %v480
        %v482 = vld [vmem:[%s434 + $0x34] sm:$0x1]
        %v483 = vsel %vm463, 0, %v482
        %484 = vst [vmem:[%s434 + $0x34] sm:$0x1] %v483
        %v485 = vld [vmem:[%s434 + $0x3c] sm:$0x1]
        %v486 = vsel %vm463, 0, %v485
        %487 = vst [vmem:[%s434 + $0x3c] sm:$0x1] %v486
        %v488 = vpack.c.bf16 %v419, %v419
        %v489 = vpack.c.bf16 %v420, %v420
        %v490 = vpack.c.bf16 %v421, %v421
        %v491 = vpack.c.bf16 %v422, %v422
        %v492 = vpack.c.bf16 %v423, %v423
        %v493 = vpack.c.bf16 %v424, %v424
        %v494 = vpack.c.bf16 %v425, %v425
        %v495 = vpack.c.bf16 %v426, %v426
        %v504 = vunpack.c.l.b16 %v488
        %v505 = vunpack.c.l.b16 %v489
        %v506 = vunpack.c.l.b16 %v490
        %v507 = vunpack.c.l.b16 %v491
        %v508 = vunpack.c.l.b16 %v492
        %v509 = vunpack.c.l.b16 %v493
        %v510 = vunpack.c.l.b16 %v494
        %v511 = vunpack.c.l.b16 %v495
        %v512 = vpack.c.b16 %v504, %v504
        %v513 = vpack.c.b16 %v505, %v505
        %v514 = vpack.c.b16 %v506, %v506
        %v515 = vpack.c.b16 %v507, %v507
        %v516 = vpack.c.b16 %v508, %v508
        %v517 = vpack.c.b16 %v509, %v509
        %v518 = vpack.c.b16 %v510, %v510
        %v519 = vpack.c.b16 %v511, %v511
        %v521 = vshrl.u32 %v512, 16
        %v523 = vrot.slane %v521, 7
        %v524 = vshll.u32 %v512, 16
        %v526 = vor.u32 %v523, %v524
        %v527 = vrot.slane %v523, 4
        %v529 = vshrl.u32 %v513, 16
        %v531 = vrot.slane %v529, 7
        %v532 = vshll.u32 %v513, 16
        %v534 = vor.u32 %v531, %v532
        %v535 = vrot.slane %v531, 4
        %v537 = vshrl.u32 %v514, 16
        %v539 = vrot.slane %v537, 7
        %v540 = vshll.u32 %v514, 16
        %v542 = vor.u32 %v539, %v540
        %v543 = vrot.slane %v539, 4
        %v545 = vshrl.u32 %v515, 16
        %v547 = vrot.slane %v545, 7
        %v548 = vshll.u32 %v515, 16
        %v550 = vor.u32 %v547, %v548
        %v551 = vrot.slane %v547, 4
        %v553 = vshrl.u32 %v516, 16
        %v555 = vrot.slane %v553, 7
        %v556 = vshll.u32 %v516, 16
        %v558 = vor.u32 %v555, %v556
        %v559 = vrot.slane %v555, 4
        %v561 = vshrl.u32 %v517, 16
        %v563 = vrot.slane %v561, 7
        %v564 = vshll.u32 %v517, 16
        %v566 = vor.u32 %v563, %v564
        %v567 = vrot.slane %v563, 4
        %v569 = vshrl.u32 %v518, 16
        %v571 = vrot.slane %v569, 7
        %v572 = vshll.u32 %v518, 16
        %v574 = vor.u32 %v571, %v572
        %v575 = vrot.slane %v571, 4
        %v577 = vshrl.u32 %v519, 16
        %v579 = vrot.slane %v577, 7
        %v580 = vshll.u32 %v519, 16
        %v582 = vor.u32 %v579, %v580
        %v583 = vrot.slane %v579, 4
        %vm600 = vcmask 60416
        %vm601 = vmand %vm600, %vm462
        %v602 = vld [vmem:[%s434] sm:$0xf]
        %v603 = vsel %vm601, %v526, %v602
        %604 = vst [vmem:[%s434] sm:$0xf] %v603
        %v605 = vld [vmem:[%s434 + $0x4] sm:$0x1]
        %v606 = vsel %vm437, %v527, %v605
        %607 = vst [vmem:[%s434 + $0x4] sm:$0x1] %v606
        %v608 = vld [vmem:[%s434 + $0x8] sm:$0xf]
        %v609 = vsel %vm601, %v534, %v608
        %610 = vst [vmem:[%s434 + $0x8] sm:$0xf] %v609
        %v611 = vld [vmem:[%s434 + $0xc] sm:$0x1]
        %v612 = vsel %vm437, %v535, %v611
        %613 = vst [vmem:[%s434 + $0xc] sm:$0x1] %v612
        %v614 = vld [vmem:[%s434 + $0x10] sm:$0xf]
        %v615 = vsel %vm601, %v542, %v614
        %616 = vst [vmem:[%s434 + $0x10] sm:$0xf] %v615
        %v617 = vld [vmem:[%s434 + $0x14] sm:$0x1]
        %v618 = vsel %vm437, %v543, %v617
        %619 = vst [vmem:[%s434 + $0x14] sm:$0x1] %v618
        %v620 = vld [vmem:[%s434 + $0x18] sm:$0xf]
        %v621 = vsel %vm601, %v550, %v620
        %622 = vst [vmem:[%s434 + $0x18] sm:$0xf] %v621
        %v623 = vld [vmem:[%s434 + $0x1c] sm:$0x1]
        %v624 = vsel %vm437, %v551, %v623
        %625 = vst [vmem:[%s434 + $0x1c] sm:$0x1] %v624
        %v626 = vld [vmem:[%s434 + $0x20] sm:$0xf]
        %v627 = vsel %vm601, %v558, %v626
        %628 = vst [vmem:[%s434 + $0x20] sm:$0xf] %v627
        %v629 = vld [vmem:[%s434 + $0x24] sm:$0x1]
        %v630 = vsel %vm437, %v559, %v629
        %631 = vst [vmem:[%s434 + $0x24] sm:$0x1] %v630
        %v632 = vld [vmem:[%s434 + $0x28] sm:$0xf]
        %v633 = vsel %vm601, %v566, %v632
        %634 = vst [vmem:[%s434 + $0x28] sm:$0xf] %v633
        %v635 = vld [vmem:[%s434 + $0x2c] sm:$0x1]
        %v636 = vsel %vm437, %v567, %v635
        %637 = vst [vmem:[%s434 + $0x2c] sm:$0x1] %v636
        %v638 = vld [vmem:[%s434 + $0x30] sm:$0xf]
        %v639 = vsel %vm601, %v574, %v638
        %640 = vst [vmem:[%s434 + $0x30] sm:$0xf] %v639
        %v641 = vld [vmem:[%s434 + $0x34] sm:$0x1]
        %v642 = vsel %vm437, %v575, %v641
        %643 = vst [vmem:[%s434 + $0x34] sm:$0x1] %v642
        %v644 = vld [vmem:[%s434 + $0x38] sm:$0xf]
        %v645 = vsel %vm601, %v582, %v644
        %646 = vst [vmem:[%s434 + $0x38] sm:$0xf] %v645
        %v647 = vld [vmem:[%s434 + $0x3c] sm:$0x1]
        %v648 = vsel %vm437, %v583, %v647
        %649 = vst [vmem:[%s434 + $0x3c] sm:$0x1] %v648
        %v650 = vld [vmem:[#allocation2] sm:$0xf]
        %v651 = vld [vmem:[#allocation2 + $0x8] sm:$0xf]
        %v652 = vld [vmem:[#allocation2 + $0x10] sm:$0xf]
        %v653 = vld [vmem:[#allocation2 + $0x18] sm:$0xf]
        %v654 = vld [vmem:[#allocation2 + $0x20] sm:$0xf]
        %v655 = vld [vmem:[#allocation2 + $0x28] sm:$0xf]
        %v656 = vld [vmem:[#allocation2 + $0x30] sm:$0xf]
        %v657 = vld [vmem:[#allocation2 + $0x38] sm:$0xf]
        %v658 = vld [vmem:[#allocation2 + $0x4] sm:$0x1]
        %v659 = vld [vmem:[#allocation2 + $0xc] sm:$0x1]
        %v660 = vld [vmem:[#allocation2 + $0x14] sm:$0x1]
        %v661 = vld [vmem:[#allocation2 + $0x1c] sm:$0x1]
        %v662 = vld [vmem:[#allocation2 + $0x24] sm:$0x1]
        %v663 = vld [vmem:[#allocation2 + $0x2c] sm:$0x1]
        %v664 = vld [vmem:[#allocation2 + $0x34] sm:$0x1]
        %v665 = vld [vmem:[#allocation2 + $0x3c] sm:$0x1]
        %vm666 = vsmask.f32 3328
        %vm667 = vsmask.f32 7440
        %vm668 = vmor %vm666, %vm667
        %v670 = vshrl.u32 %v650, 16
        %v672 = vrot.slane %v670, 4
        %v673 = vshll.u32 %v650, 16
        %v675 = vrot.slane %v673, 5
        %v676 = vor.u32 %v672, %v675
        %v677 = vrot.slane %v676, 4
        %v679 = vshll.u32 %v658, 16
        %v681 = vrot.slane %v679, 5
        %v682 = vsel %vm668, %v677, %v681
        %v684 = vshrl.u32 %v651, 16
        %v686 = vrot.slane %v684, 4
        %v687 = vshll.u32 %v651, 16
        %v689 = vrot.slane %v687, 5
        %v690 = vor.u32 %v686, %v689
        %v691 = vrot.slane %v690, 4
        %v693 = vshll.u32 %v659, 16
        %v695 = vrot.slane %v693, 5
        %v696 = vsel %vm668, %v691, %v695
        %v698 = vshrl.u32 %v652, 16
        %v700 = vrot.slane %v698, 4
        %v701 = vshll.u32 %v652, 16
        %v703 = vrot.slane %v701, 5
        %v704 = vor.u32 %v700, %v703
        %v705 = vrot.slane %v704, 4
        %v707 = vshll.u32 %v660, 16
        %v709 = vrot.slane %v707, 5
        %v710 = vsel %vm668, %v705, %v709
        %v712 = vshrl.u32 %v653, 16
        %v714 = vrot.slane %v712, 4
        %v715 = vshll.u32 %v653, 16
        %v717 = vrot.slane %v715, 5
        %v718 = vor.u32 %v714, %v717
        %v719 = vrot.slane %v718, 4
        %v721 = vshll.u32 %v661, 16
        %v723 = vrot.slane %v721, 5
        %v724 = vsel %vm668, %v719, %v723
        %v726 = vshrl.u32 %v654, 16
        %v728 = vrot.slane %v726, 4
        %v729 = vshll.u32 %v654, 16
        %v731 = vrot.slane %v729, 5
        %v732 = vor.u32 %v728, %v731
        %v733 = vrot.slane %v732, 4
        %v735 = vshll.u32 %v662, 16
        %v737 = vrot.slane %v735, 5
        %v738 = vsel %vm668, %v733, %v737
        %v740 = vshrl.u32 %v655, 16
        %v742 = vrot.slane %v740, 4
        %v743 = vshll.u32 %v655, 16
        %v745 = vrot.slane %v743, 5
        %v746 = vor.u32 %v742, %v745
        %v747 = vrot.slane %v746, 4
        %v749 = vshll.u32 %v663, 16
        %v751 = vrot.slane %v749, 5
        %v752 = vsel %vm668, %v747, %v751
        %v754 = vshrl.u32 %v656, 16
        %v756 = vrot.slane %v754, 4
        %v757 = vshll.u32 %v656, 16
        %v759 = vrot.slane %v757, 5
        %v760 = vor.u32 %v756, %v759
        %v761 = vrot.slane %v760, 4
        %v763 = vshll.u32 %v664, 16
        %v765 = vrot.slane %v763, 5
        %v766 = vsel %vm668, %v761, %v765
        %v768 = vshrl.u32 %v657, 16
        %v770 = vrot.slane %v768, 4
        %v771 = vshll.u32 %v657, 16
        %v773 = vrot.slane %v771, 5
        %v774 = vor.u32 %v770, %v773
        %v775 = vrot.slane %v774, 4
        %v777 = vshll.u32 %v665, 16
        %v779 = vrot.slane %v777, 5
        %v780 = vsel %vm668, %v775, %v779
        %v781 = vld [vmem:[#allocation2] sm:$0xe]
        %v782 = vld [vmem:[#allocation2 + $0x8] sm:$0xe]
        %v783 = vld [vmem:[#allocation2 + $0x10] sm:$0xe]
        %v784 = vld [vmem:[#allocation2 + $0x18] sm:$0xe]
        %v785 = vld [vmem:[#allocation2 + $0x20] sm:$0xe]
        %v786 = vld [vmem:[#allocation2 + $0x28] sm:$0xe]
        %v787 = vld [vmem:[#allocation2 + $0x30] sm:$0xe]
        %v788 = vld [vmem:[#allocation2 + $0x38] sm:$0xe]
        %vm805 = vcmask 1042432
        %vm806 = vcmask 1046532
        %vm807 = vmor %vm805, %vm806
        %v808 = vrot.slane %v781, 5
        %v809 = vrot.slane %v808, 4
        %v810 = vrot.slane %v658, 5
        %v811 = vsel %vm807, %v809, %v810
        %v812 = vrot.slane %v782, 5
        %v813 = vrot.slane %v812, 4
        %v814 = vrot.slane %v659, 5
        %v815 = vsel %vm807, %v813, %v814
        %v816 = vrot.slane %v783, 5
        %v817 = vrot.slane %v816, 4
        %v818 = vrot.slane %v660, 5
        %v819 = vsel %vm807, %v817, %v818
        %v820 = vrot.slane %v784, 5
        %v821 = vrot.slane %v820, 4
        %v822 = vrot.slane %v661, 5
        %v823 = vsel %vm807, %v821, %v822
        %v824 = vrot.slane %v785, 5
        %v825 = vrot.slane %v824, 4
        %v826 = vrot.slane %v662, 5
        %v827 = vsel %vm807, %v825, %v826
        %v828 = vrot.slane %v786, 5
        %v829 = vrot.slane %v828, 4
        %v830 = vrot.slane %v663, 5
        %v831 = vsel %vm807, %v829, %v830
        %v832 = vrot.slane %v787, 5
        %v833 = vrot.slane %v832, 4
        %v834 = vrot.slane %v664, 5
        %v835 = vsel %vm807, %v833, %v834
        %v836 = vrot.slane %v788, 5
        %v837 = vrot.slane %v836, 4
        %v838 = vrot.slane %v665, 5
        %v839 = vsel %vm807, %v837, %v838
        %v840 = vld [vmem:[%s434] sm:$0xf]
        %v841 = vld [vmem:[%s434 + $0x8] sm:$0xf]
        %v842 = vld [vmem:[%s434 + $0x10] sm:$0xf]
        %v843 = vld [vmem:[%s434 + $0x18] sm:$0xf]
        %v844 = vld [vmem:[%s434 + $0x20] sm:$0xf]
        %v845 = vld [vmem:[%s434 + $0x28] sm:$0xf]
        %v846 = vld [vmem:[%s434 + $0x30] sm:$0xf]
        %v847 = vld [vmem:[%s434 + $0x38] sm:$0xf]
        %v848 = vld [vmem:[%s434 + $0x4] sm:$0x1]
        %v849 = vld [vmem:[%s434 + $0xc] sm:$0x1]
        %v850 = vld [vmem:[%s434 + $0x14] sm:$0x1]
        %v851 = vld [vmem:[%s434 + $0x1c] sm:$0x1]
        %v852 = vld [vmem:[%s434 + $0x24] sm:$0x1]
        %v853 = vld [vmem:[%s434 + $0x2c] sm:$0x1]
        %v854 = vld [vmem:[%s434 + $0x34] sm:$0x1]
        %v855 = vld [vmem:[%s434 + $0x3c] sm:$0x1]
        %v857 = vshrl.u32 %v840, 16
        %v859 = vrot.slane %v857, 4
        %v860 = vshll.u32 %v840, 16
        %v862 = vrot.slane %v860, 5
        %v863 = vor.u32 %v859, %v862
        %v864 = vrot.slane %v863, 4
        %v866 = vshll.u32 %v848, 16
        %v868 = vrot.slane %v866, 5
        %v869 = vsel %vm668, %v864, %v868
        %v871 = vshrl.u32 %v841, 16
        %v873 = vrot.slane %v871, 4
        %v874 = vshll.u32 %v841, 16
        %v876 = vrot.slane %v874, 5
        %v877 = vor.u32 %v873, %v876
        %v878 = vrot.slane %v877, 4
        %v880 = vshll.u32 %v849, 16
        %v882 = vrot.slane %v880, 5
        %v883 = vsel %vm668, %v878, %v882
        %v885 = vshrl.u32 %v842, 16
        %v887 = vrot.slane %v885, 4
        %v888 = vshll.u32 %v842, 16
        %v890 = vrot.slane %v888, 5
        %v891 = vor.u32 %v887, %v890
        %v892 = vrot.slane %v891, 4
        %v894 = vshll.u32 %v850, 16
        %v896 = vrot.slane %v894, 5
        %v897 = vsel %vm668, %v892, %v896
        %v899 = vshrl.u32 %v843, 16
        %v901 = vrot.slane %v899, 4
        %v902 = vshll.u32 %v843, 16
        %v904 = vrot.slane %v902, 5
        %v905 = vor.u32 %v901, %v904
        %v906 = vrot.slane %v905, 4
        %v908 = vshll.u32 %v851, 16
        %v910 = vrot.slane %v908, 5
        %v911 = vsel %vm668, %v906, %v910
        %v913 = vshrl.u32 %v844, 16
        %v915 = vrot.slane %v913, 4
        %v916 = vshll.u32 %v844, 16
        %v918 = vrot.slane %v916, 5
        %v919 = vor.u32 %v915, %v918
        %v920 = vrot.slane %v919, 4
        %v922 = vshll.u32 %v852, 16
        %v924 = vrot.slane %v922, 5
        %v925 = vsel %vm668, %v920, %v924
        %v927 = vshrl.u32 %v845, 16
        %v929 = vrot.slane %v927, 4
        %v930 = vshll.u32 %v845, 16
        %v932 = vrot.slane %v930, 5
        %v933 = vor.u32 %v929, %v932
        %v934 = vrot.slane %v933, 4
        %v936 = vshll.u32 %v853, 16
        %v938 = vrot.slane %v936, 5
        %v939 = vsel %vm668, %v934, %v938
        %v941 = vshrl.u32 %v846, 16
        %v943 = vrot.slane %v941, 4
        %v944 = vshll.u32 %v846, 16
        %v946 = vrot.slane %v944, 5
        %v947 = vor.u32 %v943, %v946
        %v948 = vrot.slane %v947, 4
        %v950 = vshll.u32 %v854, 16
        %v952 = vrot.slane %v950, 5
        %v953 = vsel %vm668, %v948, %v952
        %v955 = vshrl.u32 %v847, 16
        %v957 = vrot.slane %v955, 4
        %v958 = vshll.u32 %v847, 16
        %v960 = vrot.slane %v958, 5
        %v961 = vor.u32 %v957, %v960
        %v962 = vrot.slane %v961, 4
        %v964 = vshll.u32 %v855, 16
        %v966 = vrot.slane %v964, 5
        %v967 = vsel %vm668, %v962, %v966
        %v968 = vld [vmem:[%s434] sm:$0xe]
        %v969 = vld [vmem:[%s434 + $0x8] sm:$0xe]
        %v970 = vld [vmem:[%s434 + $0x10] sm:$0xe]
        %v971 = vld [vmem:[%s434 + $0x18] sm:$0xe]
        %v972 = vld [vmem:[%s434 + $0x20] sm:$0xe]
        %v973 = vld [vmem:[%s434 + $0x28] sm:$0xe]
        %v974 = vld [vmem:[%s434 + $0x30] sm:$0xe]
        %v975 = vld [vmem:[%s434 + $0x38] sm:$0xe]
        %v992 = vrot.slane %v968, 5
        %v993 = vrot.slane %v992, 4
        %v994 = vrot.slane %v848, 5
        %v995 = vsel %vm807, %v993, %v994
        %v996 = vrot.slane %v969, 5
        %v997 = vrot.slane %v996, 4
        %v998 = vrot.slane %v849, 5
        %v999 = vsel %vm807, %v997, %v998
        %v1000 = vrot.slane %v970, 5
        %v1001 = vrot.slane %v1000, 4
        %v1002 = vrot.slane %v850, 5
        %v1003 = vsel %vm807, %v1001, %v1002
        %v1004 = vrot.slane %v971, 5
        %v1005 = vrot.slane %v1004, 4
        %v1006 = vrot.slane %v851, 5
        %v1007 = vsel %vm807, %v1005, %v1006
        %v1008 = vrot.slane %v972, 5
        %v1009 = vrot.slane %v1008, 4
        %v1010 = vrot.slane %v852, 5
        %v1011 = vsel %vm807, %v1009, %v1010
        %v1012 = vrot.slane %v973, 5
        %v1013 = vrot.slane %v1012, 4
        %v1014 = vrot.slane %v853, 5
        %v1015 = vsel %vm807, %v1013, %v1014
        %v1016 = vrot.slane %v974, 5
        %v1017 = vrot.slane %v1016, 4
        %v1018 = vrot.slane %v854, 5
        %v1019 = vsel %vm807, %v1017, %v1018
        %v1020 = vrot.slane %v975, 5
        %v1021 = vrot.slane %v1020, 4
        %v1022 = vrot.slane %v855, 5
        %v1023 = vsel %vm807, %v1021, %v1022
        %s1024 = scalar_lea.vmem [#allocation2], 16
        %v1025 = vld [vmem:[%s1024] sm:$0xf]
        %v1026 = vld [vmem:[%s1024 + $0x8] sm:$0xf]
        %v1027 = vld [vmem:[%s1024 + $0x10] sm:$0xf]
        %v1028 = vld [vmem:[%s1024 + $0x18] sm:$0xf]
        %v1029 = vld [vmem:[%s1024 + $0x20] sm:$0xf]
        %v1030 = vld [vmem:[%s1024 + $0x28] sm:$0xf]
        %v1031 = vld [vmem:[%s1024 + $0x30] sm:$0xf]
        %v1032 = vld [vmem:[%s1024 + $0x38] sm:$0xf]
        %v1033 = vld [vmem:[%s1024 + $0x4] sm:$0x1]
        %v1034 = vld [vmem:[%s1024 + $0xc] sm:$0x1]
        %v1035 = vld [vmem:[%s1024 + $0x14] sm:$0x1]
        %v1036 = vld [vmem:[%s1024 + $0x1c] sm:$0x1]
        %v1037 = vld [vmem:[%s1024 + $0x24] sm:$0x1]
        %v1038 = vld [vmem:[%s1024 + $0x2c] sm:$0x1]
        %v1039 = vld [vmem:[%s1024 + $0x34] sm:$0x1]
        %v1040 = vld [vmem:[%s1024 + $0x3c] sm:$0x1]
        %v1042 = vshrl.u32 %v1025, 16
        %v1044 = vrot.slane %v1042, 4
        %v1045 = vshll.u32 %v1025, 16
        %v1047 = vrot.slane %v1045, 5
        %v1048 = vor.u32 %v1044, %v1047
        %v1049 = vrot.slane %v1048, 4
        %v1051 = vshll.u32 %v1033, 16
        %v1053 = vrot.slane %v1051, 5
        %v1054 = vsel %vm668, %v1049, %v1053
        %v1056 = vshrl.u32 %v1026, 16
        %v1058 = vrot.slane %v1056, 4
        %v1059 = vshll.u32 %v1026, 16
        %v1061 = vrot.slane %v1059, 5
        %v1062 = vor.u32 %v1058, %v1061
        %v1063 = vrot.slane %v1062, 4
        %v1065 = vshll.u32 %v1034, 16
        %v1067 = vrot.slane %v1065, 5
        %v1068 = vsel %vm668, %v1063, %v1067
        %v1070 = vshrl.u32 %v1027, 16
        %v1072 = vrot.slane %v1070, 4
        %v1073 = vshll.u32 %v1027, 16
        %v1075 = vrot.slane %v1073, 5
        %v1076 = vor.u32 %v1072, %v1075
        %v1077 = vrot.slane %v1076, 4
        %v1079 = vshll.u32 %v1035, 16
        %v1081 = vrot.slane %v1079, 5
        %v1082 = vsel %vm668, %v1077, %v1081
        %v1084 = vshrl.u32 %v1028, 16
        %v1086 = vrot.slane %v1084, 4
        %v1087 = vshll.u32 %v1028, 16
        %v1089 = vrot.slane %v1087, 5
        %v1090 = vor.u32 %v1086, %v1089
        %v1091 = vrot.slane %v1090, 4
        %v1093 = vshll.u32 %v1036, 16
        %v1095 = vrot.slane %v1093, 5
        %v1096 = vsel %vm668, %v1091, %v1095
        %v1098 = vshrl.u32 %v1029, 16
        %v1100 = vrot.slane %v1098, 4
        %v1101 = vshll.u32 %v1029, 16
        %v1103 = vrot.slane %v1101, 5
        %v1104 = vor.u32 %v1100, %v1103
        %v1105 = vrot.slane %v1104, 4
        %v1107 = vshll.u32 %v1037, 16
        %v1109 = vrot.slane %v1107, 5
        %v1110 = vsel %vm668, %v1105, %v1109
        %v1112 = vshrl.u32 %v1030, 16
        %v1114 = vrot.slane %v1112, 4
        %v1115 = vshll.u32 %v1030, 16
        %v1117 = vrot.slane %v1115, 5
        %v1118 = vor.u32 %v1114, %v1117
        %v1119 = vrot.slane %v1118, 4
        %v1121 = vshll.u32 %v1038, 16
        %v1123 = vrot.slane %v1121, 5
        %v1124 = vsel %vm668, %v1119, %v1123
        %v1126 = vshrl.u32 %v1031, 16
        %v1128 = vrot.slane %v1126, 4
        %v1129 = vshll.u32 %v1031, 16
        %v1131 = vrot.slane %v1129, 5
        %v1132 = vor.u32 %v1128, %v1131
        %v1133 = vrot.slane %v1132, 4
        %v1135 = vshll.u32 %v1039, 16
        %v1137 = vrot.slane %v1135, 5
        %v1138 = vsel %vm668, %v1133, %v1137
        %v1140 = vshrl.u32 %v1032, 16
        %v1142 = vrot.slane %v1140, 4
        %v1143 = vshll.u32 %v1032, 16
        %v1145 = vrot.slane %v1143, 5
        %v1146 = vor.u32 %v1142, %v1145
        %v1147 = vrot.slane %v1146, 4
        %v1149 = vshll.u32 %v1040, 16
        %v1151 = vrot.slane %v1149, 5
        %v1152 = vsel %vm668, %v1147, %v1151
        %v1153 = vld [vmem:[%s1024] sm:$0xe]
        %v1154 = vld [vmem:[%s1024 + $0x8] sm:$0xe]
        %v1155 = vld [vmem:[%s1024 + $0x10] sm:$0xe]
        %v1156 = vld [vmem:[%s1024 + $0x18] sm:$0xe]
        %v1157 = vld [vmem:[%s1024 + $0x20] sm:$0xe]
        %v1158 = vld [vmem:[%s1024 + $0x28] sm:$0xe]
        %v1159 = vld [vmem:[%s1024 + $0x30] sm:$0xe]
        %v1160 = vld [vmem:[%s1024 + $0x38] sm:$0xe]
        %v1177 = vrot.slane %v1153, 5
        %v1178 = vrot.slane %v1177, 4
        %v1179 = vrot.slane %v1033, 5
        %v1180 = vsel %vm807, %v1178, %v1179
        %v1181 = vrot.slane %v1154, 5
        %v1182 = vrot.slane %v1181, 4
        %v1183 = vrot.slane %v1034, 5
        %v1184 = vsel %vm807, %v1182, %v1183
        %v1185 = vrot.slane %v1155, 5
        %v1186 = vrot.slane %v1185, 4
        %v1187 = vrot.slane %v1035, 5
        %v1188 = vsel %vm807, %v1186, %v1187
        %v1189 = vrot.slane %v1156, 5
        %v1190 = vrot.slane %v1189, 4
        %v1191 = vrot.slane %v1036, 5
        %v1192 = vsel %vm807, %v1190, %v1191
        %v1193 = vrot.slane %v1157, 5
        %v1194 = vrot.slane %v1193, 4
        %v1195 = vrot.slane %v1037, 5
        %v1196 = vsel %vm807, %v1194, %v1195
        %v1197 = vrot.slane %v1158, 5
        %v1198 = vrot.slane %v1197, 4
        %v1199 = vrot.slane %v1038, 5
        %v1200 = vsel %vm807, %v1198, %v1199
        %v1201 = vrot.slane %v1159, 5
        %v1202 = vrot.slane %v1201, 4
        %v1203 = vrot.slane %v1039, 5
        %v1204 = vsel %vm807, %v1202, %v1203
        %v1205 = vrot.slane %v1160, 5
        %v1206 = vrot.slane %v1205, 4
        %v1207 = vrot.slane %v1040, 5
        %v1208 = vsel %vm807, %v1206, %v1207
        %v1217 = vunpack.c.l.b16 %v650
        %v1218 = vunpack.c.l.b16 %v651
        %v1219 = vunpack.c.l.b16 %v652
        %v1220 = vunpack.c.l.b16 %v653
        %v1221 = vunpack.c.l.b16 %v654
        %v1222 = vunpack.c.l.b16 %v655
        %v1223 = vunpack.c.l.b16 %v656
        %v1224 = vunpack.c.l.b16 %v657
        %v1225 = vpack.c.b16 %v1218, %v1217
        %v1226 = vpack.c.b16 %v1220, %v1219
        %v1227 = vpack.c.b16 %v1222, %v1221
        %v1228 = vpack.c.b16 %v1224, %v1223
        %v1229 = vunpack.c.l.b16 %v682
        %v1230 = vunpack.c.l.b16 %v696
        %v1231 = vunpack.c.l.b16 %v710
        %v1232 = vunpack.c.l.b16 %v724
        %v1233 = vunpack.c.l.b16 %v738
        %v1234 = vunpack.c.l.b16 %v752
        %v1235 = vunpack.c.l.b16 %v766
        %v1236 = vunpack.c.l.b16 %v780
        %v1237 = vpack.c.b16 %v1230, %v1229
        %v1238 = vpack.c.b16 %v1232, %v1231
        %v1239 = vpack.c.b16 %v1234, %v1233
        %v1240 = vpack.c.b16 %v1236, %v1235
        %1241 = vrot.lane.b32.xlu0 %v1237, 8
        %v1242 = vpop.permute.xlu0 %1241
        %1243 = vrot.lane.b32.xlu0 %v1238, 8
        %v1244 = vpop.permute.xlu0 %1243
        %1245 = vrot.lane.b32.xlu0 %v1239, 8
        %v1246 = vpop.permute.xlu0 %1245
        %1247 = vrot.lane.b32.xlu0 %v1240, 8
        %v1248 = vpop.permute.xlu0 %1247
        %v1249 = vunpack.c.l.b16 %v811
        %v1250 = vunpack.c.l.b16 %v815
        %v1251 = vunpack.c.l.b16 %v819
        %v1252 = vunpack.c.l.b16 %v823
        %v1253 = vunpack.c.l.b16 %v827
        %v1254 = vunpack.c.l.b16 %v831
        %v1255 = vunpack.c.l.b16 %v835
        %v1256 = vunpack.c.l.b16 %v839
        %v1257 = vpack.c.b16 %v1250, %v1249
        %v1258 = vpack.c.b16 %v1252, %v1251
        %v1259 = vpack.c.b16 %v1254, %v1253
        %v1260 = vpack.c.b16 %v1256, %v1255
        %1261 = vrot.lane.b32.xlu0 %v1257, 16
        %v1262 = vpop.permute.xlu0 %1261
        %1263 = vrot.lane.b32.xlu0 %v1258, 16
        %v1264 = vpop.permute.xlu0 %1263
        %1265 = vrot.lane.b32.xlu0 %v1259, 16
        %v1266 = vpop.permute.xlu0 %1265
        %1267 = vrot.lane.b32.xlu0 %v1260, 16
        %v1268 = vpop.permute.xlu0 %1267
        %v1277 = vunpack.c.l.b16 %v840
        %v1278 = vunpack.c.l.b16 %v841
        %v1279 = vunpack.c.l.b16 %v842
        %v1280 = vunpack.c.l.b16 %v843
        %v1281 = vunpack.c.l.b16 %v844
        %v1282 = vunpack.c.l.b16 %v845
        %v1283 = vunpack.c.l.b16 %v846
        %v1284 = vunpack.c.l.b16 %v847
        %v1285 = vpack.c.b16 %v1278, %v1277
        %v1286 = vpack.c.b16 %v1280, %v1279
        %v1287 = vpack.c.b16 %v1282, %v1281
        %v1288 = vpack.c.b16 %v1284, %v1283
        %1289 = vrot.lane.b32.xlu0 %v1285, 24
        %v1290 = vpop.permute.xlu0 %1289
        %1291 = vrot.lane.b32.xlu0 %v1286, 24
        %v1292 = vpop.permute.xlu0 %1291
        %1293 = vrot.lane.b32.xlu0 %v1287, 24
        %v1294 = vpop.permute.xlu0 %1293
        %1295 = vrot.lane.b32.xlu0 %v1288, 24
        %v1296 = vpop.permute.xlu0 %1295
        %v1297 = vunpack.c.l.b16 %v869
        %v1298 = vunpack.c.l.b16 %v883
        %v1299 = vunpack.c.l.b16 %v897
        %v1300 = vunpack.c.l.b16 %v911
        %v1301 = vunpack.c.l.b16 %v925
        %v1302 = vunpack.c.l.b16 %v939
        %v1303 = vunpack.c.l.b16 %v953
        %v1304 = vunpack.c.l.b16 %v967
        %v1305 = vpack.c.b16 %v1298, %v1297
        %v1306 = vpack.c.b16 %v1300, %v1299
        %v1307 = vpack.c.b16 %v1302, %v1301
        %v1308 = vpack.c.b16 %v1304, %v1303
        %1309 = vrot.lane.b32.xlu0 %v1305, 32
        %v1310 = vpop.permute.xlu0 %1309
        %1311 = vrot.lane.b32.xlu0 %v1306, 32
        %v1312 = vpop.permute.xlu0 %1311
        %1313 = vrot.lane.b32.xlu0 %v1307, 32
        %v1314 = vpop.permute.xlu0 %1313
        %1315 = vrot.lane.b32.xlu0 %v1308, 32
        %v1316 = vpop.permute.xlu0 %1315
        %v1317 = vunpack.c.l.b16 %v995
        %v1318 = vunpack.c.l.b16 %v999
        %v1319 = vunpack.c.l.b16 %v1003
        %v1320 = vunpack.c.l.b16 %v1007
        %v1321 = vunpack.c.l.b16 %v1011
        %v1322 = vunpack.c.l.b16 %v1015
        %v1323 = vunpack.c.l.b16 %v1019
        %v1324 = vunpack.c.l.b16 %v1023
        %v1325 = vpack.c.b16 %v1318, %v1317
        %v1326 = vpack.c.b16 %v1320, %v1319
        %v1327 = vpack.c.b16 %v1322, %v1321
        %v1328 = vpack.c.b16 %v1324, %v1323
        %1329 = vrot.lane.b32.xlu0 %v1325, 40
        %v1330 = vpop.permute.xlu0 %1329
        %1331 = vrot.lane.b32.xlu0 %v1326, 40
        %v1332 = vpop.permute.xlu0 %1331
        %1333 = vrot.lane.b32.xlu0 %v1327, 40
        %v1334 = vpop.permute.xlu0 %1333
        %1335 = vrot.lane.b32.xlu0 %v1328, 40
        %v1336 = vpop.permute.xlu0 %1335
        %v1345 = vunpack.c.l.b16 %v1025
        %v1346 = vunpack.c.l.b16 %v1026
        %v1347 = vunpack.c.l.b16 %v1027
        %v1348 = vunpack.c.l.b16 %v1028
        %v1349 = vunpack.c.l.b16 %v1029
        %v1350 = vunpack.c.l.b16 %v1030
        %v1351 = vunpack.c.l.b16 %v1031
        %v1352 = vunpack.c.l.b16 %v1032
        %v1353 = vpack.c.b16 %v1346, %v1345
        %v1354 = vpack.c.b16 %v1348, %v1347
        %v1355 = vpack.c.b16 %v1350, %v1349
        %v1356 = vpack.c.b16 %v1352, %v1351
        %1357 = vrot.lane.b32.xlu0 %v1353, 48
        %v1358 = vpop.permute.xlu0 %1357
        %1359 = vrot.lane.b32.xlu0 %v1354, 48
        %v1360 = vpop.permute.xlu0 %1359
        %1361 = vrot.lane.b32.xlu0 %v1355, 48
        %v1362 = vpop.permute.xlu0 %1361
        %1363 = vrot.lane.b32.xlu0 %v1356, 48
        %v1364 = vpop.permute.xlu0 %1363
        %v1365 = vunpack.c.l.b16 %v1054
        %v1366 = vunpack.c.l.b16 %v1068
        %v1367 = vunpack.c.l.b16 %v1082
        %v1368 = vunpack.c.l.b16 %v1096
        %v1369 = vunpack.c.l.b16 %v1110
        %v1370 = vunpack.c.l.b16 %v1124
        %v1371 = vunpack.c.l.b16 %v1138
        %v1372 = vunpack.c.l.b16 %v1152
        %v1373 = vpack.c.b16 %v1366, %v1365
        %v1374 = vpack.c.b16 %v1368, %v1367
        %v1375 = vpack.c.b16 %v1370, %v1369
        %v1376 = vpack.c.b16 %v1372, %v1371
        %1377 = vrot.lane.b32.xlu0 %v1373, 56
        %v1378 = vpop.permute.xlu0 %1377
        %1379 = vrot.lane.b32.xlu0 %v1374, 56
        %v1380 = vpop.permute.xlu0 %1379
        %1381 = vrot.lane.b32.xlu0 %v1375, 56
        %v1382 = vpop.permute.xlu0 %1381
        %1383 = vrot.lane.b32.xlu0 %v1376, 56
        %v1384 = vpop.permute.xlu0 %1383
        %v1385 = vunpack.c.l.b16 %v1180
        %v1386 = vunpack.c.l.b16 %v1184
        %v1387 = vunpack.c.l.b16 %v1188
        %v1388 = vunpack.c.l.b16 %v1192
        %v1389 = vunpack.c.l.b16 %v1196
        %v1390 = vunpack.c.l.b16 %v1200
        %v1391 = vunpack.c.l.b16 %v1204
        %v1392 = vunpack.c.l.b16 %v1208
        %v1393 = vpack.c.b16 %v1386, %v1385
        %v1394 = vpack.c.b16 %v1388, %v1387
        %v1395 = vpack.c.b16 %v1390, %v1389
        %v1396 = vpack.c.b16 %v1392, %v1391
        %1397 = vrot.lane.b32.xlu0 %v1393, 64
        %v1398 = vpop.permute.xlu0 %1397
        %1399 = vrot.lane.b32.xlu0 %v1394, 64
        %v1400 = vpop.permute.xlu0 %1399
        %1401 = vrot.lane.b32.xlu0 %v1395, 64
        %v1402 = vpop.permute.xlu0 %1401
        %1403 = vrot.lane.b32.xlu0 %v1396, 64
        %v1404 = vpop.permute.xlu0 %1403
        %vm1405 = vcmask 64512
        %v1408 = vsel %vm1405, %v1225, %v1242
        %v1411 = vsel %vm1405, %v1226, %v1244
        %v1414 = vsel %vm1405, %v1227, %v1246
        %v1417 = vsel %vm1405, %v1228, %v1248
        %v1419 = vsel %vm341, %v1408, %v1262
        %v1421 = vsel %vm341, %v1411, %v1264
        %v1423 = vsel %vm341, %v1414, %v1266
        %v1425 = vsel %vm341, %v1417, %v1268
        %vm1426 = vcmask 195584
        %v1428 = vsel %vm1426, %v1419, %v1290
        %v1430 = vsel %vm1426, %v1421, %v1292
        %v1432 = vsel %vm1426, %v1423, %v1294
        %v1434 = vsel %vm1426, %v1425, %v1296
        %vm1435 = vcmask 261120
        %v1437 = vsel %vm1435, %v1428, %v1310
        %v1439 = vsel %vm1435, %v1430, %v1312
        %v1441 = vsel %vm1435, %v1432, %v1314
        %v1443 = vsel %vm1435, %v1434, %v1316
        %vm1444 = vcmask 326656
        %v1446 = vsel %vm1444, %v1437, %v1330
        %v1448 = vsel %vm1444, %v1439, %v1332
        %v1450 = vsel %vm1444, %v1441, %v1334
        %v1452 = vsel %vm1444, %v1443, %v1336
        %vm1453 = vcmask 392192
        %v1455 = vsel %vm1453, %v1446, %v1358
        %v1457 = vsel %vm1453, %v1448, %v1360
        %v1459 = vsel %vm1453, %v1450, %v1362
        %v1461 = vsel %vm1453, %v1452, %v1364
        %vm1462 = vcmask 457728
        %v1464 = vsel %vm1462, %v1455, %v1378
        %v1466 = vsel %vm1462, %v1457, %v1380
        %v1468 = vsel %vm1462, %v1459, %v1382
        %v1470 = vsel %vm1462, %v1461, %v1384
        %vm1471 = vcmask 523264
        %v1473 = vsel %vm1471, %v1464, %v1398
        %v1475 = vsel %vm1471, %v1466, %v1400
        %v1477 = vsel %vm1471, %v1468, %v1402
        %v1479 = vsel %vm1471, %v1470, %v1404
        %v1480 = vld [vmem:[%s3] sm:$0xf]
        %v1481 = vld [vmem:[%s3 + $0x4] sm:$0xf]
        %v1482 = vld [vmem:[%s3 + $0x8] sm:$0xf]
        %v1483 = vld [vmem:[%s3 + $0xc] sm:$0xf]
        %v1484 = vld [vmem:[%s3 + $0x10] sm:$0xf]
        %v1485 = vld [vmem:[%s3 + $0x14] sm:$0xf]
        %v1486 = vld [vmem:[%s3 + $0x18] sm:$0xf]
        %v1487 = vld [vmem:[%s3 + $0x1c] sm:$0xf]
        %v1488 = vld [vmem:[%s3 + $0x20] sm:$0xf]
        %v1489 = vld [vmem:[%s4] sm:$0x1]
        %v1491 = vlaneseq
        %v1492 = vshrl.u32 %v1491, 7
        %v1493 = vsub.s32 0, %v1492
        %v1494 = vrot.slane %v1489, %v1493
        %v1505 = vunpack.c.l.b16 %v1480
        %v1506 = vunpack.c.l.b16 %v1481
        %v1507 = vunpack.c.l.b16 %v1482
        %v1508 = vunpack.c.l.b16 %v1483
        %v1509 = vunpack.c.l.b16 %v1484
        %v1510 = vunpack.c.l.b16 %v1485
        %v1511 = vunpack.c.l.b16 %v1486
        %v1512 = vunpack.c.l.b16 %v1487
        %v1513 = vunpack.c.l.b16 %v1488
        %v1514 = vpack.c.b16 %v1506, %v1505
        %v1515 = vpack.c.b16 %v1508, %v1507
        %v1516 = vpack.c.b16 %v1510, %v1509
        %v1517 = vpack.c.b16 %v1512, %v1511
        %v1518 = vpack.c.b16 %v1513, %v1513
        %vm1523 = vcmask 588800
        %v1524 = vsel %vm1523, %v1473, 0
        %v1526 = vsel %vm1523, %v1475, 0
        %v1528 = vsel %vm1523, %v1477, 0
        %v1530 = vsel %vm1523, %v1479, 0
        %vm1532 = vcmask 1043456
        %v1534 = vsel %vm1532, %v1518, 0
        %1536 = vmatprep.subr.bf16.mxu0 0
        %1537 = vmatpush1.bf16.msra.mxu0 0
        %1538 = vmatprep.subr.bf16.mxu0 0
        %1539 = vmatpush1.bf16.msra.mxu0 0
        %1540 = vmatprep.subr.bf16.mxu0 0
        %1541 = vmatpush1.bf16.msra.mxu0 0
        %1542 = vmatprep.subr.bf16.mxu0 0
        %1543 = vmatpush1.bf16.msra.mxu0 %v1534
        %1544 = vmatprep.subr.bf16.mxu0 0
        %1545 = vmatpush1.bf16.msra.mxu0 %v1517
        %1546 = vmatprep.subr.bf16.mxu0 0
        %1547 = vmatpush1.bf16.msra.mxu0 %v1516
        %1548 = vmatprep.subr.bf16.mxu0 0
        %1549 = vmatpush1.bf16.msra.mxu0 %v1515
        %1550 = vmatprep.subr.bf16.mxu0 0
        %1551 = vmatpush1.bf16.msra.mxu0 %v1514
        %1552 = vmatprep.subr.bf16.mxu0 0
        %1553 = vmatpush2.bf16.msra.mxu0 0
        %1554 = vmatprep.subr.bf16.mxu0 0
        %1555 = vmatpush2.bf16.msra.mxu0 0
        %1556 = vmatprep.subr.bf16.mxu0 0
        %1557 = vmatpush2.bf16.msra.mxu0 0
        %1558 = vmatprep.subr.bf16.mxu0 0
        %1559 = vmatpush2.bf16.msra.mxu0 0
        %1560 = vmatprep.subr.bf16.mxu0 0
        %1561 = vmatpush2.bf16.msra.mxu0 0
        %1562 = vmatprep.subr.bf16.mxu0 0
        %1563 = vmatpush2.bf16.msra.mxu0 0
        %1564 = vmatprep.subr.bf16.mxu0 0
        %1565 = vmatpush2.bf16.msra.mxu0 0
        %1566 = vmatprep.subr.bf16.mxu0 0
        %1567 = vmatpush2.bf16.msra.mxu0 0
        %1568 = vmatprep.mubr.bf16.mxu0 0
        %1569 = vmatmul.mubr.bf16.gmra.mxu0 %v1524
        %v1570 = vpop.f32.mrf.mxu0
        %v1571 = vadd.f32 %v1494, %v1570
        %v1572 = vpop.f32.mrf.mxu0
        %v1573 = vpop.f32.mrf.mxu0
        %v1574 = vadd.f32 %v1494, %v1573
        %v1575 = vpop.f32.mrf.mxu0
        %1576 = vmatprep.mubr.bf16.mxu0 0
        %1577 = vmatmul.mubr.bf16.gmra.mxu0 %v1526
        %v1578 = vpop.f32.mrf.mxu0
        %v1579 = vadd.f32 %v1494, %v1578
        %v1580 = vpop.f32.mrf.mxu0
        %v1581 = vpop.f32.mrf.mxu0
        %v1582 = vadd.f32 %v1494, %v1581
        %v1583 = vpop.f32.mrf.mxu0
        %1584 = vmatprep.mubr.bf16.mxu0 0
        %1585 = vmatmul.mubr.bf16.gmra.mxu0 %v1528
        %v1586 = vpop.f32.mrf.mxu0
        %v1587 = vadd.f32 %v1494, %v1586
        %v1588 = vpop.f32.mrf.mxu0
        %v1589 = vpop.f32.mrf.mxu0
        %v1590 = vadd.f32 %v1494, %v1589
        %v1591 = vpop.f32.mrf.mxu0
        %1592 = vmatprep.mubr.bf16.mxu0 0
        %1593 = vmatmul.mubr.bf16.gmra.mxu0 %v1530
        %v1594 = vpop.f32.mrf.mxu0
        %v1595 = vadd.f32 %v1494, %v1594
        %v1596 = vpop.f32.mrf.mxu0
        %v1597 = vpop.f32.mrf.mxu0
        %v1598 = vadd.f32 %v1494, %v1597
        %v1599 = vpop.f32.mrf.mxu0
        %1600 = vdwg.mxu0
        %v1601 = vmax.f32 %v1571, 0.0
        %v1602 = vmax.f32 %v1574, 0.0
        %v1603 = vmax.f32 %v1579, 0.0
        %v1604 = vmax.f32 %v1582, 0.0
        %v1605 = vmax.f32 %v1587, 0.0
        %v1606 = vmax.f32 %v1590, 0.0
        %v1607 = vmax.f32 %v1595, 0.0
        %v1608 = vmax.f32 %v1598, 0.0
        %v1609 = vpack.c.bf16 %v1602, %v1601
        %v1610 = vpack.c.bf16 %v1604, %v1603
        %v1611 = vpack.c.bf16 %v1606, %v1605
        %v1612 = vpack.c.bf16 %v1608, %v1607
        %v1613 = vld [vmem:[%s5] sm:$0xf]
        %v1614 = vld [vmem:[%s6] sm:$0x1]
        %v1616 = vlaneseq
        %v1617 = vshrl.u32 %v1616, 7
        %v1618 = vsub.s32 0, %v1617
        %v1619 = vrot.slane %v1614, %v1618
        %v1622 = vsel %vm1405, %v1609, 0
        %v1625 = vsel %vm1405, %v1610, 0
        %v1628 = vsel %vm1405, %v1611, 0
        %v1631 = vsel %vm1405, %v1612, 0
        %v1634 = vsel %vm1532, %v1613, 0
        %1636 = vmatprep.subr.bf16.mxu0 0
        %1637 = vmatpush1.bf16.msra.mxu0 0
        %1638 = vmatprep.subr.bf16.mxu0 0
        %1639 = vmatpush1.bf16.msra.mxu0 0
        %1640 = vmatprep.subr.bf16.mxu0 0
        %1641 = vmatpush1.bf16.msra.mxu0 0
        %1642 = vmatprep.subr.bf16.mxu0 0
        %1643 = vmatpush1.bf16.msra.mxu0 0
        %1644 = vmatprep.subr.bf16.mxu0 0
        %1645 = vmatpush1.bf16.msra.mxu0 0
        %1646 = vmatprep.subr.bf16.mxu0 0
        %1647 = vmatpush1.bf16.msra.mxu0 0
        %1648 = vmatprep.subr.bf16.mxu0 0
        %1649 = vmatpush1.bf16.msra.mxu0 0
        %1650 = vmatprep.subr.bf16.mxu0 0
        %1651 = vmatpush1.bf16.msra.mxu0 %v1634
        %1652 = vmatprep.subr.bf16.mxu0 0
        %1653 = vmatpush2.bf16.msra.mxu0 0
        %1654 = vmatprep.subr.bf16.mxu0 0
        %1655 = vmatpush2.bf16.msra.mxu0 0
        %1656 = vmatprep.subr.bf16.mxu0 0
        %1657 = vmatpush2.bf16.msra.mxu0 0
        %1658 = vmatprep.subr.bf16.mxu0 0
        %1659 = vmatpush2.bf16.msra.mxu0 0
        %1660 = vmatprep.subr.bf16.mxu0 0
        %1661 = vmatpush2.bf16.msra.mxu0 0
        %1662 = vmatprep.subr.bf16.mxu0 0
        %1663 = vmatpush2.bf16.msra.mxu0 0
        %1664 = vmatprep.subr.bf16.mxu0 0
        %1665 = vmatpush2.bf16.msra.mxu0 0
        %1666 = vmatprep.subr.bf16.mxu0 0
        %1667 = vmatpush2.bf16.msra.mxu0 0
        %1668 = vmatprep.mubr.bf16.mxu0 0
        %1669 = vmatmul.mubr.bf16.gmra.mxu0 %v1622
        %v1670 = vpop.f32.mrf.mxu0
        %v1671 = vadd.f32 %v1619, %v1670
        %v1672 = vpop.f32.mrf.mxu0
        %v1673 = vpop.f32.mrf.mxu0
        %v1674 = vadd.f32 %v1619, %v1673
        %v1675 = vpop.f32.mrf.mxu0
        %1676 = vmatprep.mubr.bf16.mxu0 0
        %1677 = vmatmul.mubr.bf16.gmra.mxu0 %v1625
        %v1678 = vpop.f32.mrf.mxu0
        %v1679 = vadd.f32 %v1619, %v1678
        %v1680 = vpop.f32.mrf.mxu0
        %v1681 = vpop.f32.mrf.mxu0
        %v1682 = vadd.f32 %v1619, %v1681
        %v1683 = vpop.f32.mrf.mxu0
        %1684 = vmatprep.mubr.bf16.mxu0 0
        %1685 = vmatmul.mubr.bf16.gmra.mxu0 %v1628
        %v1686 = vpop.f32.mrf.mxu0
        %v1687 = vadd.f32 %v1619, %v1686
        %v1688 = vpop.f32.mrf.mxu0
        %v1689 = vpop.f32.mrf.mxu0
        %v1690 = vadd.f32 %v1619, %v1689
        %v1691 = vpop.f32.mrf.mxu0
        %1692 = vmatprep.mubr.bf16.mxu0 0
        %1693 = vmatmul.mubr.bf16.gmra.mxu0 %v1631
        %v1694 = vpop.f32.mrf.mxu0
        %v1695 = vadd.f32 %v1619, %v1694
        %v1696 = vpop.f32.mrf.mxu0
        %v1697 = vpop.f32.mrf.mxu0
        %v1698 = vadd.f32 %v1619, %v1697
        %v1699 = vpop.f32.mrf.mxu0
        %1700 = vdwg.mxu0
        %1709 = vrot.lane.b32.xlu0 %v389, 120
        %v1710 = vpop.permute.xlu0 %1709
        %1711 = vrot.lane.b32.xlu0 %v392, 120
        %v1712 = vpop.permute.xlu0 %1711
        %1713 = vrot.lane.b32.xlu0 %v397, 120
        %v1714 = vpop.permute.xlu0 %1713
        %1715 = vrot.lane.b32.xlu0 %v400, 120
        %v1716 = vpop.permute.xlu0 %1715
        %1717 = vrot.lane.b32.xlu0 %v405, 120
        %v1718 = vpop.permute.xlu0 %1717
        %1719 = vrot.lane.b32.xlu0 %v408, 120
        %v1720 = vpop.permute.xlu0 %1719
        %1721 = vrot.lane.b32.xlu0 %v413, 120
        %v1722 = vpop.permute.xlu0 %1721
        %1723 = vrot.lane.b32.xlu0 %v416, 120
        %v1724 = vpop.permute.xlu0 %1723
        %v1733 = vadd.f32 %v1671, %v1710
        %v1734 = vadd.f32 %v1674, %v1712
        %v1735 = vadd.f32 %v1679, %v1714
        %v1736 = vadd.f32 %v1682, %v1716
        %v1737 = vadd.f32 %v1687, %v1718
        %v1738 = vadd.f32 %v1690, %v1720
        %v1739 = vadd.f32 %v1695, %v1722
        %v1740 = vadd.f32 %v1698, %v1724
        %v1741 = vmax.f32 %v1733, 0.0
        %v1742 = vmax.f32 %v1734, 0.0
        %v1743 = vmax.f32 %v1735, 0.0
        %v1744 = vmax.f32 %v1736, 0.0
        %v1745 = vmax.f32 %v1737, 0.0
        %v1746 = vmax.f32 %v1738, 0.0
        %v1747 = vmax.f32 %v1739, 0.0
        %v1748 = vmax.f32 %v1740, 0.0
        %1749 = vst.msk [vmem:[%s296] sm:$0xff] %vm1435, %v1741
        %1750 = vst.msk [vmem:[%s296 + $0x8] sm:$0xff] %vm1435, %v1742
        %1751 = vst.msk [vmem:[%s296 + $0x10] sm:$0xff] %vm1435, %v1743
        %1752 = vst.msk [vmem:[%s296 + $0x18] sm:$0xff] %vm1435, %v1744
        %1753 = vst.msk [vmem:[%s296 + $0x20] sm:$0xff] %vm1435, %v1745
        %1754 = vst.msk [vmem:[%s296 + $0x28] sm:$0xff] %vm1435, %v1746
        %1755 = vst.msk [vmem:[%s296 + $0x30] sm:$0xff] %vm1435, %v1747
        %1756 = vst.msk [vmem:[%s296 + $0x38] sm:$0xff] %vm1435, %v1748
        %s1757 = sand.u32 %s184, 1
        %s1758 = scalar_lea.sflag [#allocation5], %s1757
        %s1759 = sand.u32 %s184, 1
        %s1760 = smul.addr %s1759, 64
        %s1761 = scalar_lea.vmem [#allocation6], %s1760
        // Predicated region
        $region53: #{tpu_custom_call.1} parent=47 // pred_check
          %p1762 = pneg %p194
        $region54: #{tpu_custom_call.1} parent=47 // pred_check_branch
          %1764 = sbr.rel (%p1762) target = $region56
        $region55: #{tpu_custom_call.1} parent=47 // pred_region
          %s1766 = ssub.s32 1024, 1024
          %1767 = vsyncadd %s1758, %s1766
          %s1768 = smul.addr %s24, 8
          %s1769 = smul.addr %s1768, 128
          %s1770 = scalar_lea.hbm %s7, %s1769
          %s1771 = sshll.u32 %s1761, 4
          %s1772 = int_to_ptr.vmem [resolvable:$true] %s1771
          %1777 = dma.vmem_to_hbm [thread:$0]  %s1772, 1024, %s1770, %s1758, 128, 128, 8
        $region56: #{tpu_custom_call.1} parent=47 // pred_fallthru
          _
      $region48: #{tpu_custom_call.1} parent=5 // pred_fallthru
        _
      %p1778 = scmp.le.s32.totalorder 2, %s19
      // Predicated region
      $region57: #{tpu_custom_call.1} parent=5 // pred_check
        %p1779 = pneg %p1778
      $region58: #{tpu_custom_call.1} parent=5 // pred_check_branch
        %1781 = sbr.rel (%p1779) target = $region60
      $region59: #{tpu_custom_call.1} parent=5 // pred_region
        %s1782 = ssub.s32 %s19, 2
        // Predicated region
        $region61: #{tpu_custom_call.1} parent=59 // pred_check
          %p1783 = pneg %p200
        $region62: #{tpu_custom_call.1} parent=59 // pred_check_branch
          %1785 = sbr.rel (%p1783) target = $region64
        $region63: #{tpu_custom_call.1} parent=59 // pred_region
          %s1786 = sand.u32 %s185, 1
          %s1787 = scalar_lea.sflag [#allocation5], %s1786
          %s1788 = sand.u32 %s185, 1
          %s1789 = smul.addr %s1788, 64
          %s1790 = scalar_lea.vmem [#allocation6], %s1789
          %1791 = dma.done %s1787, 1024
        $region64: #{tpu_custom_call.1} parent=59 // pred_fallthru
          _
      $region60: #{tpu_custom_call.1} parent=5 // pred_fallthru
        _
    $region6: #{tpu_custom_call.1} parent=1 // loop_footer
      %s23 = sadd.s32 1, %s19
    $region7: #{tpu_custom_call.1} parent=1 // loop_footer_branch
      %18 = sbr.rel target = $region3
    $region8: #{tpu_custom_call.1} parent=1 // loop_exit
      _
    %1792 = vsyncpa [#allocation4], 1
    %s1793 = scalar_lea.sflag [#allocation4], 1
    %1794 = vsyncpa %s1793, 1
    %1795 = vsyncpa [#allocation5], 1
    %s1796 = scalar_lea.sflag [#allocation5], 1
    %1797 = vsyncpa %s1796, 1

</llo_original>
